<compile_context>
chip_gen: v7x
topology: tpu7x:2x2x1
jax: 0.10.0
libtpu: 0.0.40
codegen_flags: <defaults>
</compile_context>

<pallas_src>
import functools
import math

import jax
import jax.numpy as jnp
from jax.experimental import pallas as pl
from jax.experimental.pallas import tpu as pltpu


# ----------------------------------------------------------------------------
# In-kernel helpers
# ----------------------------------------------------------------------------
def _bn_train(y2, gamma, beta, N, C, inv_cnt):
    """Training-mode BatchNorm1d on a (N*C, E) row-major slab.

    Channel = row-within-batch-chunk (this head's seq index); statistics are the
    biased mean/var over (batch, embedding).  gamma/beta arrive as (C, 1) columns.
    """
    E = y2.shape[-1]
    y3 = y2.reshape(N, C, E)
    s = jnp.sum(y3, axis=-1, keepdims=True)              # (N, C, 1) lane reduce
    tot = s[0]
    for n in range(1, N):                                # static unroll over batch
        tot = tot + s[n]
    mu = (tot * inv_cnt).reshape(1, C, 1)
    d = y3 - mu
    v = jnp.sum(d * d, axis=-1, keepdims=True)           # (N, C, 1)
    vtot = v[0]
    for n in range(1, N):
        vtot = vtot + v[n]
    var = (vtot * inv_cnt).reshape(1, C, 1)
    scale = jax.lax.rsqrt(var + 1e-5) * gamma.reshape(1, C, 1)
    return (d * scale + beta.reshape(1, C, 1)).reshape(N * C, E)


# ----------------------------------------------------------------------------
# Fully fused kernel: SelfAttention + BN1 + FF + BN2 + fc_out, one head / step
# ----------------------------------------------------------------------------
def _fused_kernel(x_ref, wq_ref, bq_ref, wk_ref, bk_ref, wv_ref, bv_ref,
                  e_ref, wo_ref, bo_ref, g1_ref, be1_ref,
                  w1_ref, b1_ref, w2_ref, b2_ref, g2_ref, be2_ref,
                  wout_ref, bout_ref, o_ref, *, N, S, E):
    NS = N * S
    inv_cnt = 1.0 / float(N * E)

    x2 = x_ref[...].reshape(NS, E)                       # this head's rows, (n, s) order

    # ---- Q/K/V projections (softmax 1/sqrt(E) pre-folded into K) -----------
    q2 = jnp.dot(x2, wq_ref[...], preferred_element_type=jnp.float32) + bq_ref[...]
    k2 = jnp.dot(x2, wk_ref[...], preferred_element_type=jnp.float32) + bk_ref[...]
    v2 = jnp.dot(x2, wv_ref[...], preferred_element_type=jnp.float32) + bv_ref[...]
    q3 = q2.reshape(N, S, E)                             # free leading-dim reshapes
    k3 = k2.reshape(N, S, E)
    v3 = v2.reshape(N, S, E)

    # ---- attention scores, strict-upper mask, softmax ----------------------
    qk = jnp.einsum('nqd,nkd->nqk', q3, k3, preferred_element_type=jnp.float32)
    row = jax.lax.broadcasted_iota(jnp.int32, (N, S, S), 1)
    col = jax.lax.broadcasted_iota(jnp.int32, (N, S, S), 2)
    # torch: qk.masked_fill(triu(ones, 1) == 0, -1e20) -> only the strict upper kept
    qk = jnp.where(col > row, qk, jnp.float32(-1e20))
    m = jnp.max(qk, axis=-1, keepdims=True)
    p = jnp.exp(qk - m)
    attn = p * pl.reciprocal(jnp.sum(p, axis=-1, keepdims=True), approx=True)

    # ---- relative-position skew (added post-softmax, as in the model) ------
    # skew[n,i,j] = Q[n,i] . E_rel[S-1-(i-j)] for j <= i, else 0; built diagonal
    # by diagonal from qe = Q @ E_rel^T (O(S^2) live data, lowering-safe).
    qe = jnp.dot(q2, e_ref[0], preferred_element_type=jnp.float32).reshape(N, S, S)
    diff = row - col
    for d in range(S):                                   # static unroll (S is small)
        attn = attn + jnp.where(diff == d, qe[:, :, S - 1 - d:S - d], 0.0)

    # ---- attention output + output projection -------------------------------
    z3 = jnp.einsum('nqk,nkd->nqd', attn, v3, preferred_element_type=jnp.float32)
    z2 = jnp.dot(z3.reshape(NS, E), wo_ref[...],
                 preferred_element_type=jnp.float32) + bo_ref[...]

    # ---- BN1(attn_out + x), fused residual ----------------------------------
    y1 = _bn_train(z2 + x2, g1_ref[...], be1_ref[...], N, S, inv_cnt)

    # ---- feed-forward --------------------------------------------------------
    h = jnp.dot(y1, w1_ref[...], preferred_element_type=jnp.float32) + b1_ref[...]
    h = jnp.where(h >= 0, h, 0.01 * h)                   # nn.LeakyReLU() default slope
    f = jnp.dot(h, w2_ref[...], preferred_element_type=jnp.float32) + b2_ref[...]

    # ---- BN2(ff + y1) --------------------------------------------------------
    y2 = _bn_train(f + y1, g2_ref[...], be2_ref[...], N, S, inv_cnt)

    # ---- fc_out fused at the tail --------------------------------------------
    out = jnp.dot(y2, wout_ref[...], preferred_element_type=jnp.float32) + bout_ref[...]
    o_ref[...] = out.reshape(N, S, E)


def _resident(shape):
    """Full-array block that stays resident across all grid steps (no re-DMA)."""
    zeros = (0,) * len(shape)
    return pl.BlockSpec(shape, lambda h: zeros)


def fused_forward_block(x3, p, woutT, bout, N, S, H, E):
    """x3: (N, H*S, E) head-major.  One pallas_call for block + fc_out, grid=(H,)."""
    F = p['W1T'].shape[1]
    return pl.pallas_call(
        functools.partial(_fused_kernel, N=N, S=S, E=E),
        out_shape=jax.ShapeDtypeStruct((N, H * S, E), jnp.float32),
        grid_spec=pltpu.PrefetchScalarGridSpec(
            num_scalar_prefetch=0,
            grid=(H,),
            in_specs=[
                pl.BlockSpec((N, S, E), lambda h: (0, h, 0)),   # x, this head's rows
                _resident((E, E)), _resident((1, E)),           # Wq, bq
                _resident((E, E)), _resident((1, E)),           # Wk (pre-scaled), bk
                _resident((E, E)), _resident((1, E)),           # Wv, bv
                pl.BlockSpec((1, E, S), lambda h: (h, 0, 0)),   # E_rel^T, this head only
                _resident((E, E)), _resident((1, E)),           # Wo, bo
                pl.BlockSpec((S, 1), lambda h: (h, 0)),         # bn1 gamma (head-major)
                pl.BlockSpec((S, 1), lambda h: (h, 0)),         # bn1 beta
                _resident((E, F)), _resident((1, F)),           # W1, b1
                _resident((F, E)), _resident((1, E)),           # W2, b2
                pl.BlockSpec((S, 1), lambda h: (h, 0)),         # bn2 gamma
                pl.BlockSpec((S, 1), lambda h: (h, 0)),         # bn2 beta
                _resident((E, E)), _resident((1, E)),           # fc_out W, b
            ],
            out_specs=pl.BlockSpec((N, S, E), lambda h: (0, h, 0)),
        ),
        compiler_params=pltpu.CompilerParams(dimension_semantics=("parallel",)),
    )(x3, p['WqT'], p['bq'], p['WkT'], p['bk'], p['WvT'], p['bv'],
      p['ErelT'], p['WoT'], p['bo'], p['g1'], p['be1'],
      p['W1T'], p['b1'], p['W2T'], p['b2'], p['g2'], p['be2'],
      woutT, bout)


# ----------------------------------------------------------------------------
# Forward (glue in plain JAX; one layout permute at the start / end)
# ----------------------------------------------------------------------------
def decoder_forward(x, kparams, N, S, H, E):
    # s-major (N, S*H, E) -> head-major (N, H*S, E): one cheap XLA permute per forward
    xh = jnp.transpose(x.reshape(N, S, H, E), (0, 2, 1, 3)).reshape(N, H * S, E)
    # Literal reproduction: every layer sees the SAME x, only the last layer's
    # output reaches fc_out -> earlier (dead) layers skipped explicitly.
    out = fused_forward_block(xh, kparams['layers'][-1],
                              kparams['WoutT'], kparams['bout'], N, S, H, E)
    # back to the original (N, S*H, E) layout
    return jnp.transpose(out.reshape(N, H, S, E), (0, 2, 1, 3)).reshape(N, S * H, E)


# ----------------------------------------------------------------------------
# Deterministic parameter init (logical layout, same as the reference math)
# ----------------------------------------------------------------------------
def init_params(key, S, H, E_dim, num_layers, fe):
    def nrm(k, shape, scale=0.05):
        return scale * jax.random.normal(k, shape, dtype=jnp.float32)

    layers = []
    C, Fh = S * H, fe * E_dim
    for l in range(num_layers):
        ks = jax.random.split(jax.random.fold_in(key, l), 13)
        layers.append(dict(
            WqT=nrm(ks[0], (E_dim, E_dim)), bq=nrm(ks[1], (E_dim,)),
            WkT=nrm(ks[2], (E_dim, E_dim)), bk=nrm(ks[3], (E_dim,)),
            WvT=nrm(ks[4], (E_dim, E_dim)), bv=nrm(ks[5], (E_dim,)),
            E=jax.random.normal(ks[6], (H, S, E_dim), dtype=jnp.float32),
            WoT=nrm(ks[7], (E_dim, E_dim)), bo=nrm(ks[8], (E_dim,)),
            bn1_g=jnp.ones((C,), jnp.float32), bn1_b=jnp.zeros((C,), jnp.float32),
            bn2_g=jnp.ones((C,), jnp.float32), bn2_b=jnp.zeros((C,), jnp.float32),
            W1T=nrm(ks[9], (E_dim, Fh)), b1=nrm(ks[10], (Fh,)),
            W2T=nrm(ks[11], (Fh, E_dim)), b2=nrm(ks[12], (E_dim,)),
        ))
    k1, k2 = jax.random.split(jax.random.fold_in(key, 999))
    return dict(layers=layers, WoutT=nrm(k1, (E_dim, E_dim)), bout=nrm(k2, (E_dim,)))


def prep_kernel_params(params, S, H, E):
    """Kernel-layout params: 1/sqrt(E) folded into K, per-head E_rel pre-transposed
    (NOT tiled by batch), BN gamma/beta permuted to head-major order, 2-D biases."""
    C = S * H
    scale = 1.0 / math.sqrt(E)
    r = jnp.arange(C)
    perm = (r % S) * H + (r // S)            # head-major channel -> original BN channel
    layers = []
    for p in params['layers']:
        layers.append(dict(
            WqT=p['WqT'], bq=p['bq'].reshape(1, E),
            WkT=p['WkT'] * scale, bk=(p['bk'] * scale).reshape(1, E),
            WvT=p['WvT'], bv=p['bv'].reshape(1, E),
            ErelT=jnp.transpose(p['E'], (0, 2, 1)),          # (H, E, S)
            WoT=p['WoT'], bo=p['bo'].reshape(1, E),
            g1=p['bn1_g'][perm].reshape(C, 1), be1=p['bn1_b'][perm].reshape(C, 1),
            W1T=p['W1T'], b1=p['b1'].reshape(1, p['b1'].shape[0]),
            W2T=p['W2T'], b2=p['b2'].reshape(1, E),
            g2=p['bn2_g'][perm].reshape(C, 1), be2=p['bn2_b'][perm].reshape(C, 1),
        ))
    return dict(layers=layers, WoutT=params['WoutT'], bout=params['bout'].reshape(1, E))


# ----------------------------------------------------------------------------
# Pure-JAX reference (literal transcription of the PyTorch math) for sanity check
# ----------------------------------------------------------------------------
def _ref_self_attention(x, p, S, H, E_dim):
    N = x.shape[0]
    q = (x @ p['WqT'] + p['bq']).reshape(N, S, H, E_dim)
    k = (x @ p['WkT'] + p['bk']).reshape(N, S, H, E_dim)
    v = (x @ p['WvT'] + p['bv']).reshape(N, S, H, E_dim)
    qt = jnp.transpose(q, (0, 2, 1, 3))
    QE = jnp.einsum('nhie,hje->nhij', qt, p['E'])
    i = jnp.arange(S)[:, None]
    j = jnp.arange(S)[None, :]
    QEm = jnp.where(j >= S - 1 - i, QE, 0.0)                       # _mask_positions
    padded = jnp.pad(QEm, ((0, 0), (0, 0), (0, 0), (1, 0)))        # _skew
    Sk = padded.reshape(N, H, S + 1, S)[:, :, 1:, :]
    qk = jnp.einsum('nqhd,nkhd->nhqk', q, k)
    qk = jnp.where(j > i, qk, -1e20)
    attn = jax.nn.softmax(qk / math.sqrt(E_dim), axis=3) + Sk
    z = jnp.einsum('nhql,nlhd->nqhd', attn, v).reshape(N, S * H, E_dim)
    return z @ p['WoT'] + p['bo']


def _ref_bn(y, g, b):
    mu = y.mean(axis=(0, 2), keepdims=True)
    var = ((y - mu) ** 2).mean(axis=(0, 2), keepdims=True)
    return (y - mu) / jnp.sqrt(var + 1e-5) * g[None, :, None] + b[None, :, None]


def _ref_block(x, p, S, H, E_dim):
    a = _ref_self_attention(x, p, S, H, E_dim)
    x1 = _ref_bn(a + x, p['bn1_g'], p['bn1_b'])
    h = x1 @ p['W1T'] + p['b1']
    h = jnp.where(h >= 0, h, 0.01 * h)
    ff = h @ p['W2T'] + p['b2']
    return _ref_bn(ff + x1, p['bn2_g'], p['bn2_b'])


def _ref_encoder(x, params, S, H, E_dim):
    out = None
    for p in params['layers']:
        out = _ref_block(x, p, S, H, E_dim)
    return out @ params['WoutT'] + params['bout']


# ----------------------------------------------------------------------------
if __name__ == "__main__":
    seq_len, heads, embed_size = 8, 2, 32
    num_layers, forward_expansion, batch = 2, 2, 2

    key = jax.random.PRNGKey(0)
    kx, kp = jax.random.split(key)
    x = jax.random.normal(kx, (batch, seq_len * heads, embed_size), dtype=jnp.float32)
    params = init_params(kp, seq_len, heads, embed_size, num_layers, forward_expansion)
    kparams = prep_kernel_params(params, seq_len, heads, embed_size)

    fwd = jax.jit(lambda xx, pp: decoder_forward(xx, pp, batch, seq_len, heads, embed_size))
    out = jax.block_until_ready(fwd(x, kparams))

    ref = _ref_encoder(x, params, seq_len, heads, embed_size)
    assert out.shape == (batch, seq_len * heads, embed_size)
    max_err = float(jnp.max(jnp.abs(out - ref)))
    assert max_err < 5e-3, f"mismatch vs reference: {max_err}"
    assert bool(jnp.all(jnp.isfinite(out)))
    print("KERNEL_OK")
</pallas_src>

<mosaic_0001>
module attributes {stable_mosaic.version = 11 : i64} {
  func.func @_fused_kernel(%arg0: i32, %arg1: memref<2x8x32xf32, #tpu.memory_space<vmem>>, %arg2: memref<32x32xf32, #tpu.memory_space<vmem>>, %arg3: memref<1x32xf32, #tpu.memory_space<vmem>>, %arg4: memref<32x32xf32, #tpu.memory_space<vmem>>, %arg5: memref<1x32xf32, #tpu.memory_space<vmem>>, %arg6: memref<32x32xf32, #tpu.memory_space<vmem>>, %arg7: memref<1x32xf32, #tpu.memory_space<vmem>>, %arg8: memref<1x32x8xf32, #tpu.memory_space<vmem>>, %arg9: memref<32x32xf32, #tpu.memory_space<vmem>>, %arg10: memref<1x32xf32, #tpu.memory_space<vmem>>, %arg11: memref<8x1xf32, #tpu.memory_space<vmem>>, %arg12: memref<8x1xf32, #tpu.memory_space<vmem>>, %arg13: memref<32x64xf32, #tpu.memory_space<vmem>>, %arg14: memref<1x64xf32, #tpu.memory_space<vmem>>, %arg15: memref<64x32xf32, #tpu.memory_space<vmem>>, %arg16: memref<1x32xf32, #tpu.memory_space<vmem>>, %arg17: memref<8x1xf32, #tpu.memory_space<vmem>>, %arg18: memref<8x1xf32, #tpu.memory_space<vmem>>, %arg19: memref<32x32xf32, #tpu.memory_space<vmem>>, %arg20: memref<1x32xf32, #tpu.memory_space<vmem>>, %arg21: memref<2x8x32xf32, #tpu.memory_space<vmem>>) attributes {dimension_semantics = [#tpu.dimension_semantics<parallel>], iteration_bounds = array<i64: 2>, scalar_prefetch = 0 : i64, scratch_operands = 0 : i64, tpu.core_type = #tpu.core_type<tc>, window_params = [{transform_indices = @transform_0, window_bounds = array<i64: 2, 8, 32>}, {pipeline_mode = #tpu.pipeline_mode<synchronous>, transform_indices = @transform_1, window_bounds = array<i64: 32, 32>}, {pipeline_mode = #tpu.pipeline_mode<synchronous>, transform_indices = @transform_2, window_bounds = array<i64: 1, 32>}, {pipeline_mode = #tpu.pipeline_mode<synchronous>, transform_indices = @transform_3, window_bounds = array<i64: 32, 32>}, {pipeline_mode = #tpu.pipeline_mode<synchronous>, transform_indices = @transform_4, window_bounds = array<i64: 1, 32>}, {pipeline_mode = #tpu.pipeline_mode<synchronous>, transform_indices = @transform_5, window_bounds = array<i64: 32, 32>}, {pipeline_mode = #tpu.pipeline_mode<synchronous>, transform_indices = @transform_6, window_bounds = array<i64: 1, 32>}, {transform_indices = @transform_7, window_bounds = array<i64: 1, 32, 8>}, {pipeline_mode = #tpu.pipeline_mode<synchronous>, transform_indices = @transform_8, window_bounds = array<i64: 32, 32>}, {pipeline_mode = #tpu.pipeline_mode<synchronous>, transform_indices = @transform_9, window_bounds = array<i64: 1, 32>}, {transform_indices = @transform_10, window_bounds = array<i64: 8, 1>}, {transform_indices = @transform_11, window_bounds = array<i64: 8, 1>}, {pipeline_mode = #tpu.pipeline_mode<synchronous>, transform_indices = @transform_12, window_bounds = array<i64: 32, 64>}, {pipeline_mode = #tpu.pipeline_mode<synchronous>, transform_indices = @transform_13, window_bounds = array<i64: 1, 64>}, {pipeline_mode = #tpu.pipeline_mode<synchronous>, transform_indices = @transform_14, window_bounds = array<i64: 64, 32>}, {pipeline_mode = #tpu.pipeline_mode<synchronous>, transform_indices = @transform_15, window_bounds = array<i64: 1, 32>}, {transform_indices = @transform_16, window_bounds = array<i64: 8, 1>}, {transform_indices = @transform_17, window_bounds = array<i64: 8, 1>}, {pipeline_mode = #tpu.pipeline_mode<synchronous>, transform_indices = @transform_18, window_bounds = array<i64: 32, 32>}, {pipeline_mode = #tpu.pipeline_mode<synchronous>, transform_indices = @transform_19, window_bounds = array<i64: 1, 32>}, {transform_indices = @transform_20, window_bounds = array<i64: 2, 8, 32>}]} {
    %c0 = arith.constant 0 : index
    %c0_0 = arith.constant 0 : index
    %c0_1 = arith.constant 0 : index
    %0 = vector.load %arg1[%c0, %c0_0, %c0_1] : memref<2x8x32xf32, #tpu.memory_space<vmem>>, vector<2x8x32xf32>
    %1 = vector.shape_cast %0 : vector<2x8x32xf32> to vector<16x32xf32>
    %c0_2 = arith.constant 0 : index
    %c0_3 = arith.constant 0 : index
    %2 = vector.load %arg2[%c0_2, %c0_3] : memref<32x32xf32, #tpu.memory_space<vmem>>, vector<32x32xf32>
    %cst = arith.constant dense<0.000000e+00> : vector<16x32xf32>
    %3 = tpu.matmul %1, %2, %cst {dimension_numbers = #tpu.dot_dimension_numbers<[1], [0], [0], [1], [0, 0, 1, 1], [], []>} : vector<16x32xf32>, vector<32x32xf32>, vector<16x32xf32> -> vector<16x32xf32>
    %c0_4 = arith.constant 0 : index
    %c0_5 = arith.constant 0 : index
    %4 = vector.load %arg3[%c0_4, %c0_5] : memref<1x32xf32, #tpu.memory_space<vmem>>, vector<1x32xf32>
    %5 = vector.broadcast %4 : vector<1x32xf32> to vector<16x32xf32>
    %6 = arith.addf %3, %5 : vector<16x32xf32>
    %c0_6 = arith.constant 0 : index
    %c0_7 = arith.constant 0 : index
    %7 = vector.load %arg4[%c0_6, %c0_7] : memref<32x32xf32, #tpu.memory_space<vmem>>, vector<32x32xf32>
    %cst_8 = arith.constant dense<0.000000e+00> : vector<16x32xf32>
    %8 = tpu.matmul %1, %7, %cst_8 {dimension_numbers = #tpu.dot_dimension_numbers<[1], [0], [0], [1], [0, 0, 1, 1], [], []>} : vector<16x32xf32>, vector<32x32xf32>, vector<16x32xf32> -> vector<16x32xf32>
    %c0_9 = arith.constant 0 : index
    %c0_10 = arith.constant 0 : index
    %9 = vector.load %arg5[%c0_9, %c0_10] : memref<1x32xf32, #tpu.memory_space<vmem>>, vector<1x32xf32>
    %10 = vector.broadcast %9 : vector<1x32xf32> to vector<16x32xf32>
    %11 = arith.addf %8, %10 : vector<16x32xf32>
    %c0_11 = arith.constant 0 : index
    %c0_12 = arith.constant 0 : index
    %12 = vector.load %arg6[%c0_11, %c0_12] : memref<32x32xf32, #tpu.memory_space<vmem>>, vector<32x32xf32>
    %cst_13 = arith.constant dense<0.000000e+00> : vector<16x32xf32>
    %13 = tpu.matmul %1, %12, %cst_13 {dimension_numbers = #tpu.dot_dimension_numbers<[1], [0], [0], [1], [0, 0, 1, 1], [], []>} : vector<16x32xf32>, vector<32x32xf32>, vector<16x32xf32> -> vector<16x32xf32>
    %c0_14 = arith.constant 0 : index
    %c0_15 = arith.constant 0 : index
    %14 = vector.load %arg7[%c0_14, %c0_15] : memref<1x32xf32, #tpu.memory_space<vmem>>, vector<1x32xf32>
    %15 = vector.broadcast %14 : vector<1x32xf32> to vector<16x32xf32>
    %16 = arith.addf %13, %15 : vector<16x32xf32>
    %17 = vector.shape_cast %6 : vector<16x32xf32> to vector<2x8x32xf32>
    %18 = vector.shape_cast %11 : vector<16x32xf32> to vector<2x8x32xf32>
    %19 = vector.shape_cast %16 : vector<16x32xf32> to vector<2x8x32xf32>
    "tpu.trace_start"() <{level = 10 : i32, message = "nqd,nkd->nqk"}> : () -> ()
    %cst_16 = arith.constant dense<0.000000e+00> : vector<2x8x8xf32>
    %20 = tpu.matmul %17, %18, %cst_16 {dimension_numbers = #tpu.dot_dimension_numbers<[2], [2], [1], [1], [0, 0, 0, 1, 1, 1], [0], [0]>} : vector<2x8x32xf32>, vector<2x8x32xf32>, vector<2x8x8xf32> -> vector<2x8x8xf32>
    "tpu.trace_stop"() : () -> ()
    %21 = tpu.iota {dimensions = array<i32: 1>} : vector<2x8x8xi32>
    %22 = tpu.iota {dimensions = array<i32: 2>} : vector<2x8x8xi32>
    %23 = arith.cmpi sgt, %22, %21 : vector<2x8x8xi32>
    %cst_17 = arith.constant -1.000000e+20 : f32
    %24 = vector.broadcast %cst_17 : f32 to vector<2x8x8xf32>
    %25 = arith.select %23, %20, %24 : vector<2x8x8xi1>, vector<2x8x8xf32>
    %cst_18 = arith.constant dense<0xFF800000> : vector<2x8xf32>
    %26 = vector.multi_reduction <maximumf>, %25, %cst_18 [2] : vector<2x8x8xf32> to vector<2x8xf32>
    %27 = vector.shape_cast %26 : vector<2x8xf32> to vector<2x8x1xf32>
    %28 = vector.broadcast %27 : vector<2x8x1xf32> to vector<2x8x8xf32>
    %29 = arith.subf %25, %28 : vector<2x8x8xf32>
    %30 = math.exp %29 : vector<2x8x8xf32>
    %cst_19 = arith.constant dense<0.000000e+00> : vector<2x8xf32>
    %31 = vector.multi_reduction <add>, %30, %cst_19 [2] : vector<2x8x8xf32> to vector<2x8xf32>
    %32 = vector.shape_cast %31 : vector<2x8xf32> to vector<2x8x1xf32>
    %33 = tpu.reciprocal %32 {approx = true} : vector<2x8x1xf32> -> vector<2x8x1xf32>
    %34 = vector.broadcast %33 : vector<2x8x1xf32> to vector<2x8x8xf32>
    %35 = arith.mulf %30, %34 : vector<2x8x8xf32>
    %c0_20 = arith.constant 0 : index
    %c0_21 = arith.constant 0 : index
    %c0_22 = arith.constant 0 : index
    %36 = vector.load %arg8[%c0_20, %c0_21, %c0_22] : memref<1x32x8xf32, #tpu.memory_space<vmem>>, vector<1x32x8xf32>
    %37 = vector.shape_cast %36 : vector<1x32x8xf32> to vector<32x8xf32>
    %cst_23 = arith.constant dense<0.000000e+00> : vector<16x8xf32>
    %38 = tpu.matmul %6, %37, %cst_23 {dimension_numbers = #tpu.dot_dimension_numbers<[1], [0], [0], [1], [0, 0, 1, 1], [], []>} : vector<16x32xf32>, vector<32x8xf32>, vector<16x8xf32> -> vector<16x8xf32>
    %39 = vector.shape_cast %38 : vector<16x8xf32> to vector<2x8x8xf32>
    %40 = arith.subi %21, %22 : vector<2x8x8xi32>
    %c0_i32 = arith.constant 0 : i32
    %41 = vector.broadcast %c0_i32 : i32 to vector<2x8x8xi32>
    %42 = arith.cmpi eq, %40, %41 : vector<2x8x8xi32>
    %43 = vector.extract_strided_slice %39 {offsets = [0, 0, 7], sizes = [2, 8, 1], strides = [1, 1, 1]} : vector<2x8x8xf32> to vector<2x8x1xf32>
    %cst_24 = arith.constant 0.000000e+00 : f32
    %44 = vector.shape_cast %43 : vector<2x8x1xf32> to vector<2x8x1xf32>
    %45 = vector.broadcast %44 : vector<2x8x1xf32> to vector<2x8x8xf32>
    %46 = vector.broadcast %cst_24 : f32 to vector<2x8x8xf32>
    %47 = arith.select %42, %45, %46 : vector<2x8x8xi1>, vector<2x8x8xf32>
    %48 = arith.addf %35, %47 : vector<2x8x8xf32>
    %c1_i32 = arith.constant 1 : i32
    %49 = vector.broadcast %c1_i32 : i32 to vector<2x8x8xi32>
    %50 = arith.cmpi eq, %40, %49 : vector<2x8x8xi32>
    %51 = vector.extract_strided_slice %39 {offsets = [0, 0, 6], sizes = [2, 8, 1], strides = [1, 1, 1]} : vector<2x8x8xf32> to vector<2x8x1xf32>
    %cst_25 = arith.constant 0.000000e+00 : f32
    %52 = vector.shape_cast %51 : vector<2x8x1xf32> to vector<2x8x1xf32>
    %53 = vector.broadcast %52 : vector<2x8x1xf32> to vector<2x8x8xf32>
    %54 = vector.broadcast %cst_25 : f32 to vector<2x8x8xf32>
    %55 = arith.select %50, %53, %54 : vector<2x8x8xi1>, vector<2x8x8xf32>
    %56 = arith.addf %48, %55 : vector<2x8x8xf32>
    %c2_i32 = arith.constant 2 : i32
    %57 = vector.broadcast %c2_i32 : i32 to vector<2x8x8xi32>
    %58 = arith.cmpi eq, %40, %57 : vector<2x8x8xi32>
    %59 = vector.extract_strided_slice %39 {offsets = [0, 0, 5], sizes = [2, 8, 1], strides = [1, 1, 1]} : vector<2x8x8xf32> to vector<2x8x1xf32>
    %cst_26 = arith.constant 0.000000e+00 : f32
    %60 = vector.shape_cast %59 : vector<2x8x1xf32> to vector<2x8x1xf32>
    %61 = vector.broadcast %60 : vector<2x8x1xf32> to vector<2x8x8xf32>
    %62 = vector.broadcast %cst_26 : f32 to vector<2x8x8xf32>
    %63 = arith.select %58, %61, %62 : vector<2x8x8xi1>, vector<2x8x8xf32>
    %64 = arith.addf %56, %63 : vector<2x8x8xf32>
    %c3_i32 = arith.constant 3 : i32
    %65 = vector.broadcast %c3_i32 : i32 to vector<2x8x8xi32>
    %66 = arith.cmpi eq, %40, %65 : vector<2x8x8xi32>
    %67 = vector.extract_strided_slice %39 {offsets = [0, 0, 4], sizes = [2, 8, 1], strides = [1, 1, 1]} : vector<2x8x8xf32> to vector<2x8x1xf32>
    %cst_27 = arith.constant 0.000000e+00 : f32
    %68 = vector.shape_cast %67 : vector<2x8x1xf32> to vector<2x8x1xf32>
    %69 = vector.broadcast %68 : vector<2x8x1xf32> to vector<2x8x8xf32>
    %70 = vector.broadcast %cst_27 : f32 to vector<2x8x8xf32>
    %71 = arith.select %66, %69, %70 : vector<2x8x8xi1>, vector<2x8x8xf32>
    %72 = arith.addf %64, %71 : vector<2x8x8xf32>
    %c4_i32 = arith.constant 4 : i32
    %73 = vector.broadcast %c4_i32 : i32 to vector<2x8x8xi32>
    %74 = arith.cmpi eq, %40, %73 : vector<2x8x8xi32>
    %75 = vector.extract_strided_slice %39 {offsets = [0, 0, 3], sizes = [2, 8, 1], strides = [1, 1, 1]} : vector<2x8x8xf32> to vector<2x8x1xf32>
    %cst_28 = arith.constant 0.000000e+00 : f32
    %76 = vector.shape_cast %75 : vector<2x8x1xf32> to vector<2x8x1xf32>
    %77 = vector.broadcast %76 : vector<2x8x1xf32> to vector<2x8x8xf32>
    %78 = vector.broadcast %cst_28 : f32 to vector<2x8x8xf32>
    %79 = arith.select %74, %77, %78 : vector<2x8x8xi1>, vector<2x8x8xf32>
    %80 = arith.addf %72, %79 : vector<2x8x8xf32>
    %c5_i32 = arith.constant 5 : i32
    %81 = vector.broadcast %c5_i32 : i32 to vector<2x8x8xi32>
    %82 = arith.cmpi eq, %40, %81 : vector<2x8x8xi32>
    %83 = vector.extract_strided_slice %39 {offsets = [0, 0, 2], sizes = [2, 8, 1], strides = [1, 1, 1]} : vector<2x8x8xf32> to vector<2x8x1xf32>
    %cst_29 = arith.constant 0.000000e+00 : f32
    %84 = vector.shape_cast %83 : vector<2x8x1xf32> to vector<2x8x1xf32>
    %85 = vector.broadcast %84 : vector<2x8x1xf32> to vector<2x8x8xf32>
    %86 = vector.broadcast %cst_29 : f32 to vector<2x8x8xf32>
    %87 = arith.select %82, %85, %86 : vector<2x8x8xi1>, vector<2x8x8xf32>
    %88 = arith.addf %80, %87 : vector<2x8x8xf32>
    %c6_i32 = arith.constant 6 : i32
    %89 = vector.broadcast %c6_i32 : i32 to vector<2x8x8xi32>
    %90 = arith.cmpi eq, %40, %89 : vector<2x8x8xi32>
    %91 = vector.extract_strided_slice %39 {offsets = [0, 0, 1], sizes = [2, 8, 1], strides = [1, 1, 1]} : vector<2x8x8xf32> to vector<2x8x1xf32>
    %cst_30 = arith.constant 0.000000e+00 : f32
    %92 = vector.shape_cast %91 : vector<2x8x1xf32> to vector<2x8x1xf32>
    %93 = vector.broadcast %92 : vector<2x8x1xf32> to vector<2x8x8xf32>
    %94 = vector.broadcast %cst_30 : f32 to vector<2x8x8xf32>
    %95 = arith.select %90, %93, %94 : vector<2x8x8xi1>, vector<2x8x8xf32>
    %96 = arith.addf %88, %95 : vector<2x8x8xf32>
    %c7_i32 = arith.constant 7 : i32
    %97 = vector.broadcast %c7_i32 : i32 to vector<2x8x8xi32>
    %98 = arith.cmpi eq, %40, %97 : vector<2x8x8xi32>
    %99 = vector.extract_strided_slice %39 {offsets = [0, 0, 0], sizes = [2, 8, 1], strides = [1, 1, 1]} : vector<2x8x8xf32> to vector<2x8x1xf32>
    %cst_31 = arith.constant 0.000000e+00 : f32
    %100 = vector.shape_cast %99 : vector<2x8x1xf32> to vector<2x8x1xf32>
    %101 = vector.broadcast %100 : vector<2x8x1xf32> to vector<2x8x8xf32>
    %102 = vector.broadcast %cst_31 : f32 to vector<2x8x8xf32>
    %103 = arith.select %98, %101, %102 : vector<2x8x8xi1>, vector<2x8x8xf32>
    %104 = arith.addf %96, %103 : vector<2x8x8xf32>
    "tpu.trace_start"() <{level = 10 : i32, message = "nqk,nkd->nqd"}> : () -> ()
    %cst_32 = arith.constant dense<0.000000e+00> : vector<2x8x32xf32>
    %105 = tpu.matmul %104, %19, %cst_32 {dimension_numbers = #tpu.dot_dimension_numbers<[2], [1], [1], [2], [0, 0, 0, 1, 1, 2], [0], [0]>} : vector<2x8x8xf32>, vector<2x8x32xf32>, vector<2x8x32xf32> -> vector<2x8x32xf32>
    "tpu.trace_stop"() : () -> ()
    %106 = vector.shape_cast %105 : vector<2x8x32xf32> to vector<16x32xf32>
    %c0_33 = arith.constant 0 : index
    %c0_34 = arith.constant 0 : index
    %107 = vector.load %arg9[%c0_33, %c0_34] : memref<32x32xf32, #tpu.memory_space<vmem>>, vector<32x32xf32>
    %cst_35 = arith.constant dense<0.000000e+00> : vector<16x32xf32>
    %108 = tpu.matmul %106, %107, %cst_35 {dimension_numbers = #tpu.dot_dimension_numbers<[1], [0], [0], [1], [0, 0, 1, 1], [], []>} : vector<16x32xf32>, vector<32x32xf32>, vector<16x32xf32> -> vector<16x32xf32>
    %c0_36 = arith.constant 0 : index
    %c0_37 = arith.constant 0 : index
    %109 = vector.load %arg10[%c0_36, %c0_37] : memref<1x32xf32, #tpu.memory_space<vmem>>, vector<1x32xf32>
    %110 = vector.broadcast %109 : vector<1x32xf32> to vector<16x32xf32>
    %111 = arith.addf %108, %110 : vector<16x32xf32>
    %112 = arith.addf %111, %1 : vector<16x32xf32>
    %c0_38 = arith.constant 0 : index
    %c0_39 = arith.constant 0 : index
    %113 = vector.load %arg11[%c0_38, %c0_39] : memref<8x1xf32, #tpu.memory_space<vmem>>, vector<8x1xf32>
    %c0_40 = arith.constant 0 : index
    %c0_41 = arith.constant 0 : index
    %114 = vector.load %arg12[%c0_40, %c0_41] : memref<8x1xf32, #tpu.memory_space<vmem>>, vector<8x1xf32>
    %115 = vector.shape_cast %112 : vector<16x32xf32> to vector<2x8x32xf32>
    %cst_42 = arith.constant dense<0.000000e+00> : vector<2x8xf32>
    %116 = vector.multi_reduction <add>, %115, %cst_42 [2] : vector<2x8x32xf32> to vector<2x8xf32>
    %117 = vector.shape_cast %116 : vector<2x8xf32> to vector<2x8x1xf32>
    %118 = vector.extract_strided_slice %117 {offsets = [0, 0, 0], sizes = [1, 8, 1], strides = [1, 1, 1]} : vector<2x8x1xf32> to vector<1x8x1xf32>
    %119 = vector.shape_cast %118 : vector<1x8x1xf32> to vector<8x1xf32>
    %120 = vector.extract_strided_slice %117 {offsets = [1, 0, 0], sizes = [1, 8, 1], strides = [1, 1, 1]} : vector<2x8x1xf32> to vector<1x8x1xf32>
    %121 = vector.shape_cast %120 : vector<1x8x1xf32> to vector<8x1xf32>
    %122 = arith.addf %119, %121 : vector<8x1xf32>
    %cst_43 = arith.constant 1.562500e-02 : f32
    %123 = vector.broadcast %cst_43 : f32 to vector<8x1xf32>
    %124 = arith.mulf %122, %123 : vector<8x1xf32>
    %125 = vector.shape_cast %124 : vector<8x1xf32> to vector<1x8x1xf32>
    %126 = vector.broadcast %125 : vector<1x8x1xf32> to vector<2x8x32xf32>
    %127 = arith.subf %115, %126 : vector<2x8x32xf32>
    %128 = arith.mulf %127, %127 : vector<2x8x32xf32>
    %cst_44 = arith.constant dense<0.000000e+00> : vector<2x8xf32>
    %129 = vector.multi_reduction <add>, %128, %cst_44 [2] : vector<2x8x32xf32> to vector<2x8xf32>
    %130 = vector.shape_cast %129 : vector<2x8xf32> to vector<2x8x1xf32>
    %131 = vector.extract_strided_slice %130 {offsets = [0, 0, 0], sizes = [1, 8, 1], strides = [1, 1, 1]} : vector<2x8x1xf32> to vector<1x8x1xf32>
    %132 = vector.shape_cast %131 : vector<1x8x1xf32> to vector<8x1xf32>
    %133 = vector.extract_strided_slice %130 {offsets = [1, 0, 0], sizes = [1, 8, 1], strides = [1, 1, 1]} : vector<2x8x1xf32> to vector<1x8x1xf32>
    %134 = vector.shape_cast %133 : vector<1x8x1xf32> to vector<8x1xf32>
    %135 = arith.addf %132, %134 : vector<8x1xf32>
    %cst_45 = arith.constant 1.562500e-02 : f32
    %136 = vector.broadcast %cst_45 : f32 to vector<8x1xf32>
    %137 = arith.mulf %135, %136 : vector<8x1xf32>
    %138 = vector.shape_cast %137 : vector<8x1xf32> to vector<1x8x1xf32>
    %cst_46 = arith.constant 9.99999974E-6 : f32
    %139 = vector.broadcast %cst_46 : f32 to vector<1x8x1xf32>
    %140 = arith.addf %138, %139 : vector<1x8x1xf32>
    %141 = math.rsqrt %140 : vector<1x8x1xf32>
    %142 = vector.shape_cast %113 : vector<8x1xf32> to vector<1x8x1xf32>
    %143 = arith.mulf %141, %142 : vector<1x8x1xf32>
    %144 = vector.broadcast %143 : vector<1x8x1xf32> to vector<2x8x32xf32>
    %145 = arith.mulf %127, %144 : vector<2x8x32xf32>
    %146 = vector.shape_cast %114 : vector<8x1xf32> to vector<1x8x1xf32>
    %147 = vector.broadcast %146 : vector<1x8x1xf32> to vector<2x8x32xf32>
    %148 = arith.addf %145, %147 : vector<2x8x32xf32>
    %149 = vector.shape_cast %148 : vector<2x8x32xf32> to vector<16x32xf32>
    %c0_47 = arith.constant 0 : index
    %c0_48 = arith.constant 0 : index
    %150 = vector.load %arg13[%c0_47, %c0_48] : memref<32x64xf32, #tpu.memory_space<vmem>>, vector<32x64xf32>
    %cst_49 = arith.constant dense<0.000000e+00> : vector<16x64xf32>
    %151 = tpu.matmul %149, %150, %cst_49 {dimension_numbers = #tpu.dot_dimension_numbers<[1], [0], [0], [1], [0, 0, 1, 1], [], []>} : vector<16x32xf32>, vector<32x64xf32>, vector<16x64xf32> -> vector<16x64xf32>
    %c0_50 = arith.constant 0 : index
    %c0_51 = arith.constant 0 : index
    %152 = vector.load %arg14[%c0_50, %c0_51] : memref<1x64xf32, #tpu.memory_space<vmem>>, vector<1x64xf32>
    %153 = vector.broadcast %152 : vector<1x64xf32> to vector<16x64xf32>
    %154 = arith.addf %151, %153 : vector<16x64xf32>
    %cst_52 = arith.constant 0.000000e+00 : f32
    %155 = vector.broadcast %cst_52 : f32 to vector<16x64xf32>
    %156 = arith.cmpf oge, %154, %155 : vector<16x64xf32>
    %cst_53 = arith.constant 0.00999999977 : f32
    %157 = vector.broadcast %cst_53 : f32 to vector<16x64xf32>
    %158 = arith.mulf %157, %154 : vector<16x64xf32>
    %159 = arith.select %156, %154, %158 : vector<16x64xi1>, vector<16x64xf32>
    %c0_54 = arith.constant 0 : index
    %c0_55 = arith.constant 0 : index
    %160 = vector.load %arg15[%c0_54, %c0_55] : memref<64x32xf32, #tpu.memory_space<vmem>>, vector<64x32xf32>
    %cst_56 = arith.constant dense<0.000000e+00> : vector<16x32xf32>
    %161 = tpu.matmul %159, %160, %cst_56 {dimension_numbers = #tpu.dot_dimension_numbers<[1], [0], [0], [1], [0, 0, 1, 1], [], []>} : vector<16x64xf32>, vector<64x32xf32>, vector<16x32xf32> -> vector<16x32xf32>
    %c0_57 = arith.constant 0 : index
    %c0_58 = arith.constant 0 : index
    %162 = vector.load %arg16[%c0_57, %c0_58] : memref<1x32xf32, #tpu.memory_space<vmem>>, vector<1x32xf32>
    %163 = vector.broadcast %162 : vector<1x32xf32> to vector<16x32xf32>
    %164 = arith.addf %161, %163 : vector<16x32xf32>
    %165 = arith.addf %164, %149 : vector<16x32xf32>
    %c0_59 = arith.constant 0 : index
    %c0_60 = arith.constant 0 : index
    %166 = vector.load %arg17[%c0_59, %c0_60] : memref<8x1xf32, #tpu.memory_space<vmem>>, vector<8x1xf32>
    %c0_61 = arith.constant 0 : index
    %c0_62 = arith.constant 0 : index
    %167 = vector.load %arg18[%c0_61, %c0_62] : memref<8x1xf32, #tpu.memory_space<vmem>>, vector<8x1xf32>
    %168 = vector.shape_cast %165 : vector<16x32xf32> to vector<2x8x32xf32>
    %cst_63 = arith.constant dense<0.000000e+00> : vector<2x8xf32>
    %169 = vector.multi_reduction <add>, %168, %cst_63 [2] : vector<2x8x32xf32> to vector<2x8xf32>
    %170 = vector.shape_cast %169 : vector<2x8xf32> to vector<2x8x1xf32>
    %171 = vector.extract_strided_slice %170 {offsets = [0, 0, 0], sizes = [1, 8, 1], strides = [1, 1, 1]} : vector<2x8x1xf32> to vector<1x8x1xf32>
    %172 = vector.shape_cast %171 : vector<1x8x1xf32> to vector<8x1xf32>
    %173 = vector.extract_strided_slice %170 {offsets = [1, 0, 0], sizes = [1, 8, 1], strides = [1, 1, 1]} : vector<2x8x1xf32> to vector<1x8x1xf32>
    %174 = vector.shape_cast %173 : vector<1x8x1xf32> to vector<8x1xf32>
    %175 = arith.addf %172, %174 : vector<8x1xf32>
    %cst_64 = arith.constant 1.562500e-02 : f32
    %176 = vector.broadcast %cst_64 : f32 to vector<8x1xf32>
    %177 = arith.mulf %175, %176 : vector<8x1xf32>
    %178 = vector.shape_cast %177 : vector<8x1xf32> to vector<1x8x1xf32>
    %179 = vector.broadcast %178 : vector<1x8x1xf32> to vector<2x8x32xf32>
    %180 = arith.subf %168, %179 : vector<2x8x32xf32>
    %181 = arith.mulf %180, %180 : vector<2x8x32xf32>
    %cst_65 = arith.constant dense<0.000000e+00> : vector<2x8xf32>
    %182 = vector.multi_reduction <add>, %181, %cst_65 [2] : vector<2x8x32xf32> to vector<2x8xf32>
    %183 = vector.shape_cast %182 : vector<2x8xf32> to vector<2x8x1xf32>
    %184 = vector.extract_strided_slice %183 {offsets = [0, 0, 0], sizes = [1, 8, 1], strides = [1, 1, 1]} : vector<2x8x1xf32> to vector<1x8x1xf32>
    %185 = vector.shape_cast %184 : vector<1x8x1xf32> to vector<8x1xf32>
    %186 = vector.extract_strided_slice %183 {offsets = [1, 0, 0], sizes = [1, 8, 1], strides = [1, 1, 1]} : vector<2x8x1xf32> to vector<1x8x1xf32>
    %187 = vector.shape_cast %186 : vector<1x8x1xf32> to vector<8x1xf32>
    %188 = arith.addf %185, %187 : vector<8x1xf32>
    %cst_66 = arith.constant 1.562500e-02 : f32
    %189 = vector.broadcast %cst_66 : f32 to vector<8x1xf32>
    %190 = arith.mulf %188, %189 : vector<8x1xf32>
    %191 = vector.shape_cast %190 : vector<8x1xf32> to vector<1x8x1xf32>
    %cst_67 = arith.constant 9.99999974E-6 : f32
    %192 = vector.broadcast %cst_67 : f32 to vector<1x8x1xf32>
    %193 = arith.addf %191, %192 : vector<1x8x1xf32>
    %194 = math.rsqrt %193 : vector<1x8x1xf32>
    %195 = vector.shape_cast %166 : vector<8x1xf32> to vector<1x8x1xf32>
    %196 = arith.mulf %194, %195 : vector<1x8x1xf32>
    %197 = vector.broadcast %196 : vector<1x8x1xf32> to vector<2x8x32xf32>
    %198 = arith.mulf %180, %197 : vector<2x8x32xf32>
    %199 = vector.shape_cast %167 : vector<8x1xf32> to vector<1x8x1xf32>
    %200 = vector.broadcast %199 : vector<1x8x1xf32> to vector<2x8x32xf32>
    %201 = arith.addf %198, %200 : vector<2x8x32xf32>
    %202 = vector.shape_cast %201 : vector<2x8x32xf32> to vector<16x32xf32>
    %c0_68 = arith.constant 0 : index
    %c0_69 = arith.constant 0 : index
    %203 = vector.load %arg19[%c0_68, %c0_69] : memref<32x32xf32, #tpu.memory_space<vmem>>, vector<32x32xf32>
    %cst_70 = arith.constant dense<0.000000e+00> : vector<16x32xf32>
    %204 = tpu.matmul %202, %203, %cst_70 {dimension_numbers = #tpu.dot_dimension_numbers<[1], [0], [0], [1], [0, 0, 1, 1], [], []>} : vector<16x32xf32>, vector<32x32xf32>, vector<16x32xf32> -> vector<16x32xf32>
    %c0_71 = arith.constant 0 : index
    %c0_72 = arith.constant 0 : index
    %205 = vector.load %arg20[%c0_71, %c0_72] : memref<1x32xf32, #tpu.memory_space<vmem>>, vector<1x32xf32>
    %206 = vector.broadcast %205 : vector<1x32xf32> to vector<16x32xf32>
    %207 = arith.addf %204, %206 : vector<16x32xf32>
    %208 = vector.shape_cast %207 : vector<16x32xf32> to vector<2x8x32xf32>
    %c0_73 = arith.constant 0 : index
    %c0_74 = arith.constant 0 : index
    %c0_75 = arith.constant 0 : index
    %209 = vector.load %arg21[%c0_73, %c0_74, %c0_75] : memref<2x8x32xf32, #tpu.memory_space<vmem>>, vector<2x8x32xf32>
    tpu.vector_store %arg21[%c0_73, %c0_74, %c0_75], %208 {strides = array<i32>} : memref<2x8x32xf32, #tpu.memory_space<vmem>>, vector<2x8x32xf32>,
    return
  }
  func.func @transform_0(%arg0: i32) -> (i32, i32, i32) {
    %c0_i32 = arith.constant 0 : i32
    %c0_i32_0 = arith.constant 0 : i32
    %c0_i32_1 = arith.constant 0 : i32
    return %c0_i32, %arg0, %c0_i32_0 : i32, i32, i32
  }
  func.func @transform_1(%arg0: i32) -> (i32, i32) {
    %c0_i32 = arith.constant 0 : i32
    %c0_i32_0 = arith.constant 0 : i32
    %c0_i32_1 = arith.constant 0 : i32
    return %c0_i32, %c0_i32_0 : i32, i32
  }
  func.func @transform_2(%arg0: i32) -> (i32, i32) {
    %c0_i32 = arith.constant 0 : i32
    %c0_i32_0 = arith.constant 0 : i32
    %c0_i32_1 = arith.constant 0 : i32
    return %c0_i32, %c0_i32_0 : i32, i32
  }
  func.func @transform_3(%arg0: i32) -> (i32, i32) {
    %c0_i32 = arith.constant 0 : i32
    %c0_i32_0 = arith.constant 0 : i32
    %c0_i32_1 = arith.constant 0 : i32
    return %c0_i32, %c0_i32_0 : i32, i32
  }
  func.func @transform_4(%arg0: i32) -> (i32, i32) {
    %c0_i32 = arith.constant 0 : i32
    %c0_i32_0 = arith.constant 0 : i32
    %c0_i32_1 = arith.constant 0 : i32
    return %c0_i32, %c0_i32_0 : i32, i32
  }
  func.func @transform_5(%arg0: i32) -> (i32, i32) {
    %c0_i32 = arith.constant 0 : i32
    %c0_i32_0 = arith.constant 0 : i32
    %c0_i32_1 = arith.constant 0 : i32
    return %c0_i32, %c0_i32_0 : i32, i32
  }
  func.func @transform_6(%arg0: i32) -> (i32, i32) {
    %c0_i32 = arith.constant 0 : i32
    %c0_i32_0 = arith.constant 0 : i32
    %c0_i32_1 = arith.constant 0 : i32
    return %c0_i32, %c0_i32_0 : i32, i32
  }
  func.func @transform_7(%arg0: i32) -> (i32, i32, i32) {
    %c0_i32 = arith.constant 0 : i32
    %c0_i32_0 = arith.constant 0 : i32
    %c0_i32_1 = arith.constant 0 : i32
    return %arg0, %c0_i32, %c0_i32_0 : i32, i32, i32
  }
  func.func @transform_8(%arg0: i32) -> (i32, i32) {
    %c0_i32 = arith.constant 0 : i32
    %c0_i32_0 = arith.constant 0 : i32
    %c0_i32_1 = arith.constant 0 : i32
    return %c0_i32, %c0_i32_0 : i32, i32
  }
  func.func @transform_9(%arg0: i32) -> (i32, i32) {
    %c0_i32 = arith.constant 0 : i32
    %c0_i32_0 = arith.constant 0 : i32
    %c0_i32_1 = arith.constant 0 : i32
    return %c0_i32, %c0_i32_0 : i32, i32
  }
  func.func @transform_10(%arg0: i32) -> (i32, i32) {
    %c0_i32 = arith.constant 0 : i32
    %c0_i32_0 = arith.constant 0 : i32
    return %arg0, %c0_i32 : i32, i32
  }
  func.func @transform_11(%arg0: i32) -> (i32, i32) {
    %c0_i32 = arith.constant 0 : i32
    %c0_i32_0 = arith.constant 0 : i32
    return %arg0, %c0_i32 : i32, i32
  }
  func.func @transform_12(%arg0: i32) -> (i32, i32) {
    %c0_i32 = arith.constant 0 : i32
    %c0_i32_0 = arith.constant 0 : i32
    %c0_i32_1 = arith.constant 0 : i32
    return %c0_i32, %c0_i32_0 : i32, i32
  }
  func.func @transform_13(%arg0: i32) -> (i32, i32) {
    %c0_i32 = arith.constant 0 : i32
    %c0_i32_0 = arith.constant 0 : i32
    %c0_i32_1 = arith.constant 0 : i32
    return %c0_i32, %c0_i32_0 : i32, i32
  }
  func.func @transform_14(%arg0: i32) -> (i32, i32) {
    %c0_i32 = arith.constant 0 : i32
    %c0_i32_0 = arith.constant 0 : i32
    %c0_i32_1 = arith.constant 0 : i32
    return %c0_i32, %c0_i32_0 : i32, i32
  }
  func.func @transform_15(%arg0: i32) -> (i32, i32) {
    %c0_i32 = arith.constant 0 : i32
    %c0_i32_0 = arith.constant 0 : i32
    %c0_i32_1 = arith.constant 0 : i32
    return %c0_i32, %c0_i32_0 : i32, i32
  }
  func.func @transform_16(%arg0: i32) -> (i32, i32) {
    %c0_i32 = arith.constant 0 : i32
    %c0_i32_0 = arith.constant 0 : i32
    return %arg0, %c0_i32 : i32, i32
  }
  func.func @transform_17(%arg0: i32) -> (i32, i32) {
    %c0_i32 = arith.constant 0 : i32
    %c0_i32_0 = arith.constant 0 : i32
    return %arg0, %c0_i32 : i32, i32
  }
  func.func @transform_18(%arg0: i32) -> (i32, i32) {
    %c0_i32 = arith.constant 0 : i32
    %c0_i32_0 = arith.constant 0 : i32
    %c0_i32_1 = arith.constant 0 : i32
    return %c0_i32, %c0_i32_0 : i32, i32
  }
  func.func @transform_19(%arg0: i32) -> (i32, i32) {
    %c0_i32 = arith.constant 0 : i32
    %c0_i32_0 = arith.constant 0 : i32
    %c0_i32_1 = arith.constant 0 : i32
    return %c0_i32, %c0_i32_0 : i32, i32
  }
  func.func @transform_20(%arg0: i32) -> (i32, i32, i32) {
    %c0_i32 = arith.constant 0 : i32
    %c0_i32_0 = arith.constant 0 : i32
    %c0_i32_1 = arith.constant 0 : i32
    return %c0_i32, %arg0, %c0_i32_0 : i32, i32, i32
  }
}

</mosaic_0001>

<llo_original>
// kernel: _lambda_.1
$region0: #{_lambda_.1}
  #allocation0 [shape = 'u32[]', space=smem, size = 0x4, offset = 0x4, fixed_abs, tag = 'smem constant byte address 0x4 - core index']
  #allocation1 [shape = 'u32[144,128]{1,0:T(1,128)}', space=vmem, size = 0x12000, scoped, tag = 'internal scratch']
  %s0 = inlined_call_operand.vmem [shape: f32[2,16,32], index: 0, kind: input, shape index: {}]
  %s1 = inlined_call_operand.vmem [shape: f32[32,32], index: 1, kind: input, shape index: {}]
  %s2 = inlined_call_operand.vmem [shape: f32[1,32], index: 2, kind: input, shape index: {}]
  %s3 = inlined_call_operand.vmem [shape: f32[32,32], index: 3, kind: input, shape index: {}]
  %s4 = inlined_call_operand.vmem [shape: f32[1,32], index: 4, kind: input, shape index: {}]
  %s5 = inlined_call_operand.vmem [shape: f32[32,32], index: 5, kind: input, shape index: {}]
  %s6 = inlined_call_operand.vmem [shape: f32[1,32], index: 6, kind: input, shape index: {}]
  %s7 = inlined_call_operand.vmem [shape: f32[2,32,8], index: 7, kind: input, shape index: {}]
  %s8 = inlined_call_operand.vmem [shape: f32[32,32], index: 8, kind: input, shape index: {}]
  %s9 = inlined_call_operand.vmem [shape: f32[1,32], index: 9, kind: input, shape index: {}]
  %s10 = inlined_call_operand.vmem [shape: f32[16,1], index: 10, kind: input, shape index: {}]
  %s11 = inlined_call_operand.vmem [shape: f32[16,1], index: 11, kind: input, shape index: {}]
  %s12 = inlined_call_operand.vmem [shape: f32[32,64], index: 12, kind: input, shape index: {}]
  %s13 = inlined_call_operand.vmem [shape: f32[1,64], index: 13, kind: input, shape index: {}]
  %s14 = inlined_call_operand.vmem [shape: f32[64,32], index: 14, kind: input, shape index: {}]
  %s15 = inlined_call_operand.vmem [shape: f32[1,32], index: 15, kind: input, shape index: {}]
  %s16 = inlined_call_operand.vmem [shape: f32[16,1], index: 16, kind: input, shape index: {}]
  %s17 = inlined_call_operand.vmem [shape: f32[16,1], index: 17, kind: input, shape index: {}]
  %s18 = inlined_call_operand.vmem [shape: f32[32,32], index: 18, kind: input, shape index: {}]
  %s19 = inlined_call_operand.vmem [shape: f32[1,32], index: 19, kind: input, shape index: {}]
  %s20 = inlined_call_operand.vmem [shape: f32[2,16,32], index: 20, kind: output, shape index: {}]
  %s21 = sld [smem:[#allocation0]]
  $region185: #{_lambda_.1} parent=0
    _
  %s23 = ssub.s32 1, %s21
  %s24 = scalar_select 0, %s23, %s21
  $region1: #{_lambda_.1} parent=0
    #allocation2 [shape = 'u8[16384]{0}', space=vmem, size = 0x4000, scoped, tag = 'input window, operand 0']
    #allocation3 [shape = 'u8[16384]{0}', space=vmem, size = 0x4000, scoped, tag = 'output window, operand 0']
    loop: start=0, step=1, limit=4
    $region2: #{_lambda_.1} parent=1 // loop_pre_header
      _
    $region3: #{_lambda_.1} parent=1 // loop_header
      %s26 = sphi 0, %s30
      %p27 = scmp.ge.s32.totalorder %s26, 4
      %s36 = sphi 0, %s38
      %s39 = sphi 0, %s36
      %s40 = sphi 0, %s39
      %s56 = sphi 0, %s40
      %s60 = sphi 0, %s60
      %s62 = sphi 0, %s60
      %s63 = sphi 0, %s62
      %s77 = sphi 0, %s63
      %s81 = sphi 0, %s81
      %s83 = sphi 0, %s81
      %s84 = sphi 0, %s83
      %s98 = sphi 0, %s84
      %s102 = sphi 0, %s102
      %s104 = sphi 0, %s102
      %s105 = sphi 0, %s104
      %s119 = sphi 0, %s105
      %s123 = sphi 0, %s123
      %s125 = sphi 0, %s123
      %s126 = sphi 0, %s125
      %s140 = sphi 0, %s126
      %s144 = sphi 0, %s144
      %s146 = sphi 0, %s144
      %s147 = sphi 0, %s146
      %s161 = sphi 0, %s147
      %s165 = sphi 0, %s165
      %s167 = sphi 0, %s165
      %s168 = sphi 0, %s167
      %s182 = sphi 0, %s168
      %s188 = sphi 0, %s190
      %s191 = sphi 0, %s188
      %s192 = sphi 0, %s191
      %s208 = sphi 0, %s192
      %s212 = sphi 0, %s212
      %s214 = sphi 0, %s212
      %s215 = sphi 0, %s214
      %s229 = sphi 0, %s215
      %s233 = sphi 0, %s233
      %s235 = sphi 0, %s233
      %s236 = sphi 0, %s235
      %s250 = sphi 0, %s236
      %s256 = sphi 0, %s258
      %s259 = sphi 0, %s256
      %s260 = sphi 0, %s259
      %s276 = sphi 0, %s260
      %s282 = sphi 0, %s284
      %s285 = sphi 0, %s282
      %s286 = sphi 0, %s285
      %s302 = sphi 0, %s286
      %s306 = sphi 0, %s306
      %s308 = sphi 0, %s306
      %s309 = sphi 0, %s308
      %s323 = sphi 0, %s309
      %s327 = sphi 0, %s327
      %s329 = sphi 0, %s327
      %s330 = sphi 0, %s329
      %s344 = sphi 0, %s330
      %s348 = sphi 0, %s348
      %s350 = sphi 0, %s348
      %s351 = sphi 0, %s350
      %s365 = sphi 0, %s351
      %s369 = sphi 0, %s369
      %s371 = sphi 0, %s369
      %s372 = sphi 0, %s371
      %s386 = sphi 0, %s372
      %s392 = sphi 0, %s394
      %s395 = sphi 0, %s392
      %s396 = sphi 0, %s395
      %s412 = sphi 0, %s396
      %s418 = sphi 0, %s420
      %s421 = sphi 0, %s418
      %s422 = sphi 0, %s421
      %s438 = sphi 0, %s422
      %s442 = sphi 0, %s442
      %s444 = sphi 0, %s442
      %s445 = sphi 0, %s444
      %s459 = sphi 0, %s445
      %s463 = sphi 0, %s463
      %s465 = sphi 0, %s463
      %s466 = sphi 0, %s465
      %s480 = sphi 0, %s466
      %s486 = sphi 0, %s488
      %s489 = sphi 0, %s486
      %s490 = sphi 0, %s489
      %s506 = sphi 0, %s490
    $region4: #{_lambda_.1} parent=1 // loop_header_branch
      %29 = sbr.rel (%p27) target = $region8
    $region5: #{_lambda_.1} parent=1 // loop_body
      %s31 = ssub.s32 %s26, 1
      %s32 = ssub.s32 %s26, 2
      %s33 = sadd.s32 %s26, 1
      %s34 = ssub.s32 %s26, %s33
      %p35 = scmp.eq.s32.totalorder %s34, 0
      %s37 = sadd.s32 %s36, 1
      %s38 = scalar_select %p35, %s36, %s37
      %p41 = pneg %p35
      %p42 = scmp.eq.s32.totalorder %s26, 1
      %p43 = por %p41, %p42
      %p44 = scmp.ne.s32.totalorder %s36, %s39
      %p45 = scmp.eq.s32.totalorder %s26, 0
      %p46 = por %p44, %p45
      %p47 = scmp.ne.s32.totalorder %s36, %s39
      %p48 = scmp.eq.s32.totalorder %s31, 1
      %p49 = por %p47, %p48
      %p50 = scmp.ne.s32.totalorder %s39, %s40
      %p51 = scmp.eq.s32.totalorder %s31, 0
      %p52 = por %p50, %p51
      %p53 = scmp.ne.s32.totalorder %s39, %s40
      %p54 = scmp.eq.s32.totalorder %s32, 1
      %p55 = por %p53, %p54
      %p57 = scmp.ne.s32.totalorder %s40, %s56
      %p58 = scmp.eq.s32.totalorder %s32, 0
      %p59 = por %p57, %p58
      %s61 = sadd.s32 %s60, 1
      %p64 = scmp.eq.s32.totalorder %s26, 1
      %p65 = scmp.ne.s32.totalorder %s60, %s62
      %p66 = scmp.eq.s32.totalorder %s26, 0
      %p67 = por %p65, %p66
      %p68 = scmp.ne.s32.totalorder %s60, %s62
      %p69 = scmp.eq.s32.totalorder %s31, 1
      %p70 = por %p68, %p69
      %p71 = scmp.ne.s32.totalorder %s62, %s63
      %p72 = scmp.eq.s32.totalorder %s31, 0
      %p73 = por %p71, %p72
      %p74 = scmp.ne.s32.totalorder %s62, %s63
      %p75 = scmp.eq.s32.totalorder %s32, 1
      %p76 = por %p74, %p75
      %p78 = scmp.ne.s32.totalorder %s63, %s77
      %p79 = scmp.eq.s32.totalorder %s32, 0
      %p80 = por %p78, %p79
      %s82 = sadd.s32 %s81, 1
      %p85 = scmp.eq.s32.totalorder %s26, 1
      %p86 = scmp.ne.s32.totalorder %s81, %s83
      %p87 = scmp.eq.s32.totalorder %s26, 0
      %p88 = por %p86, %p87
      %p89 = scmp.ne.s32.totalorder %s81, %s83
      %p90 = scmp.eq.s32.totalorder %s31, 1
      %p91 = por %p89, %p90
      %p92 = scmp.ne.s32.totalorder %s83, %s84
      %p93 = scmp.eq.s32.totalorder %s31, 0
      %p94 = por %p92, %p93
      %p95 = scmp.ne.s32.totalorder %s83, %s84
      %p96 = scmp.eq.s32.totalorder %s32, 1
      %p97 = por %p95, %p96
      %p99 = scmp.ne.s32.totalorder %s84, %s98
      %p100 = scmp.eq.s32.totalorder %s32, 0
      %p101 = por %p99, %p100
      %s103 = sadd.s32 %s102, 1
      %p106 = scmp.eq.s32.totalorder %s26, 1
      %p107 = scmp.ne.s32.totalorder %s102, %s104
      %p108 = scmp.eq.s32.totalorder %s26, 0
      %p109 = por %p107, %p108
      %p110 = scmp.ne.s32.totalorder %s102, %s104
      %p111 = scmp.eq.s32.totalorder %s31, 1
      %p112 = por %p110, %p111
      %p113 = scmp.ne.s32.totalorder %s104, %s105
      %p114 = scmp.eq.s32.totalorder %s31, 0
      %p115 = por %p113, %p114
      %p116 = scmp.ne.s32.totalorder %s104, %s105
      %p117 = scmp.eq.s32.totalorder %s32, 1
      %p118 = por %p116, %p117
      %p120 = scmp.ne.s32.totalorder %s105, %s119
      %p121 = scmp.eq.s32.totalorder %s32, 0
      %p122 = por %p120, %p121
      %s124 = sadd.s32 %s123, 1
      %p127 = scmp.eq.s32.totalorder %s26, 1
      %p128 = scmp.ne.s32.totalorder %s123, %s125
      %p129 = scmp.eq.s32.totalorder %s26, 0
      %p130 = por %p128, %p129
      %p131 = scmp.ne.s32.totalorder %s123, %s125
      %p132 = scmp.eq.s32.totalorder %s31, 1
      %p133 = por %p131, %p132
      %p134 = scmp.ne.s32.totalorder %s125, %s126
      %p135 = scmp.eq.s32.totalorder %s31, 0
      %p136 = por %p134, %p135
      %p137 = scmp.ne.s32.totalorder %s125, %s126
      %p138 = scmp.eq.s32.totalorder %s32, 1
      %p139 = por %p137, %p138
      %p141 = scmp.ne.s32.totalorder %s126, %s140
      %p142 = scmp.eq.s32.totalorder %s32, 0
      %p143 = por %p141, %p142
      %s145 = sadd.s32 %s144, 1
      %p148 = scmp.eq.s32.totalorder %s26, 1
      %p149 = scmp.ne.s32.totalorder %s144, %s146
      %p150 = scmp.eq.s32.totalorder %s26, 0
      %p151 = por %p149, %p150
      %p152 = scmp.ne.s32.totalorder %s144, %s146
      %p153 = scmp.eq.s32.totalorder %s31, 1
      %p154 = por %p152, %p153
      %p155 = scmp.ne.s32.totalorder %s146, %s147
      %p156 = scmp.eq.s32.totalorder %s31, 0
      %p157 = por %p155, %p156
      %p158 = scmp.ne.s32.totalorder %s146, %s147
      %p159 = scmp.eq.s32.totalorder %s32, 1
      %p160 = por %p158, %p159
      %p162 = scmp.ne.s32.totalorder %s147, %s161
      %p163 = scmp.eq.s32.totalorder %s32, 0
      %p164 = por %p162, %p163
      %s166 = sadd.s32 %s165, 1
      %p169 = scmp.eq.s32.totalorder %s26, 1
      %p170 = scmp.ne.s32.totalorder %s165, %s167
      %p171 = scmp.eq.s32.totalorder %s26, 0
      %p172 = por %p170, %p171
      %p173 = scmp.ne.s32.totalorder %s165, %s167
      %p174 = scmp.eq.s32.totalorder %s31, 1
      %p175 = por %p173, %p174
      %p176 = scmp.ne.s32.totalorder %s167, %s168
      %p177 = scmp.eq.s32.totalorder %s31, 0
      %p178 = por %p176, %p177
      %p179 = scmp.ne.s32.totalorder %s167, %s168
      %p180 = scmp.eq.s32.totalorder %s32, 1
      %p181 = por %p179, %p180
      %p183 = scmp.ne.s32.totalorder %s168, %s182
      %p184 = scmp.eq.s32.totalorder %s32, 0
      %p185 = por %p183, %p184
      %s186 = ssub.s32 %s26, %s33
      %p187 = scmp.eq.s32.totalorder %s186, 0
      %s189 = sadd.s32 %s188, 1
      %s190 = scalar_select %p187, %s188, %s189
      %p193 = pneg %p187
      %p194 = scmp.eq.s32.totalorder %s26, 1
      %p195 = por %p193, %p194
      %p196 = scmp.ne.s32.totalorder %s188, %s191
      %p197 = scmp.eq.s32.totalorder %s26, 0
      %p198 = por %p196, %p197
      %p199 = scmp.ne.s32.totalorder %s188, %s191
      %p200 = scmp.eq.s32.totalorder %s31, 1
      %p201 = por %p199, %p200
      %p202 = scmp.ne.s32.totalorder %s191, %s192
      %p203 = scmp.eq.s32.totalorder %s31, 0
      %p204 = por %p202, %p203
      %p205 = scmp.ne.s32.totalorder %s191, %s192
      %p206 = scmp.eq.s32.totalorder %s32, 1
      %p207 = por %p205, %p206
      %p209 = scmp.ne.s32.totalorder %s192, %s208
      %p210 = scmp.eq.s32.totalorder %s32, 0
      %p211 = por %p209, %p210
      %s213 = sadd.s32 %s212, 1
      %p216 = scmp.eq.s32.totalorder %s26, 1
      %p217 = scmp.ne.s32.totalorder %s212, %s214
      %p218 = scmp.eq.s32.totalorder %s26, 0
      %p219 = por %p217, %p218
      %p220 = scmp.ne.s32.totalorder %s212, %s214
      %p221 = scmp.eq.s32.totalorder %s31, 1
      %p222 = por %p220, %p221
      %p223 = scmp.ne.s32.totalorder %s214, %s215
      %p224 = scmp.eq.s32.totalorder %s31, 0
      %p225 = por %p223, %p224
      %p226 = scmp.ne.s32.totalorder %s214, %s215
      %p227 = scmp.eq.s32.totalorder %s32, 1
      %p228 = por %p226, %p227
      %p230 = scmp.ne.s32.totalorder %s215, %s229
      %p231 = scmp.eq.s32.totalorder %s32, 0
      %p232 = por %p230, %p231
      %s234 = sadd.s32 %s233, 1
      %p237 = scmp.eq.s32.totalorder %s26, 1
      %p238 = scmp.ne.s32.totalorder %s233, %s235
      %p239 = scmp.eq.s32.totalorder %s26, 0
      %p240 = por %p238, %p239
      %p241 = scmp.ne.s32.totalorder %s233, %s235
      %p242 = scmp.eq.s32.totalorder %s31, 1
      %p243 = por %p241, %p242
      %p244 = scmp.ne.s32.totalorder %s235, %s236
      %p245 = scmp.eq.s32.totalorder %s31, 0
      %p246 = por %p244, %p245
      %p247 = scmp.ne.s32.totalorder %s235, %s236
      %p248 = scmp.eq.s32.totalorder %s32, 1
      %p249 = por %p247, %p248
      %p251 = scmp.ne.s32.totalorder %s236, %s250
      %p252 = scmp.eq.s32.totalorder %s32, 0
      %p253 = por %p251, %p252
      %s254 = ssub.s32 %s26, %s33
      %p255 = scmp.eq.s32.totalorder %s254, 0
      %s257 = sadd.s32 %s256, 1
      %s258 = scalar_select %p255, %s256, %s257
      %p261 = pneg %p255
      %p262 = scmp.eq.s32.totalorder %s26, 1
      %p263 = por %p261, %p262
      %p264 = scmp.ne.s32.totalorder %s256, %s259
      %p265 = scmp.eq.s32.totalorder %s26, 0
      %p266 = por %p264, %p265
      %p267 = scmp.ne.s32.totalorder %s256, %s259
      %p268 = scmp.eq.s32.totalorder %s31, 1
      %p269 = por %p267, %p268
      %p270 = scmp.ne.s32.totalorder %s259, %s260
      %p271 = scmp.eq.s32.totalorder %s31, 0
      %p272 = por %p270, %p271
      %p273 = scmp.ne.s32.totalorder %s259, %s260
      %p274 = scmp.eq.s32.totalorder %s32, 1
      %p275 = por %p273, %p274
      %p277 = scmp.ne.s32.totalorder %s260, %s276
      %p278 = scmp.eq.s32.totalorder %s32, 0
      %p279 = por %p277, %p278
      %s280 = ssub.s32 %s26, %s33
      %p281 = scmp.eq.s32.totalorder %s280, 0
      %s283 = sadd.s32 %s282, 1
      %s284 = scalar_select %p281, %s282, %s283
      %p287 = pneg %p281
      %p288 = scmp.eq.s32.totalorder %s26, 1
      %p289 = por %p287, %p288
      %p290 = scmp.ne.s32.totalorder %s282, %s285
      %p291 = scmp.eq.s32.totalorder %s26, 0
      %p292 = por %p290, %p291
      %p293 = scmp.ne.s32.totalorder %s282, %s285
      %p294 = scmp.eq.s32.totalorder %s31, 1
      %p295 = por %p293, %p294
      %p296 = scmp.ne.s32.totalorder %s285, %s286
      %p297 = scmp.eq.s32.totalorder %s31, 0
      %p298 = por %p296, %p297
      %p299 = scmp.ne.s32.totalorder %s285, %s286
      %p300 = scmp.eq.s32.totalorder %s32, 1
      %p301 = por %p299, %p300
      %p303 = scmp.ne.s32.totalorder %s286, %s302
      %p304 = scmp.eq.s32.totalorder %s32, 0
      %p305 = por %p303, %p304
      %s307 = sadd.s32 %s306, 1
      %p310 = scmp.eq.s32.totalorder %s26, 1
      %p311 = scmp.ne.s32.totalorder %s306, %s308
      %p312 = scmp.eq.s32.totalorder %s26, 0
      %p313 = por %p311, %p312
      %p314 = scmp.ne.s32.totalorder %s306, %s308
      %p315 = scmp.eq.s32.totalorder %s31, 1
      %p316 = por %p314, %p315
      %p317 = scmp.ne.s32.totalorder %s308, %s309
      %p318 = scmp.eq.s32.totalorder %s31, 0
      %p319 = por %p317, %p318
      %p320 = scmp.ne.s32.totalorder %s308, %s309
      %p321 = scmp.eq.s32.totalorder %s32, 1
      %p322 = por %p320, %p321
      %p324 = scmp.ne.s32.totalorder %s309, %s323
      %p325 = scmp.eq.s32.totalorder %s32, 0
      %p326 = por %p324, %p325
      %s328 = sadd.s32 %s327, 1
      %p331 = scmp.eq.s32.totalorder %s26, 1
      %p332 = scmp.ne.s32.totalorder %s327, %s329
      %p333 = scmp.eq.s32.totalorder %s26, 0
      %p334 = por %p332, %p333
      %p335 = scmp.ne.s32.totalorder %s327, %s329
      %p336 = scmp.eq.s32.totalorder %s31, 1
      %p337 = por %p335, %p336
      %p338 = scmp.ne.s32.totalorder %s329, %s330
      %p339 = scmp.eq.s32.totalorder %s31, 0
      %p340 = por %p338, %p339
      %p341 = scmp.ne.s32.totalorder %s329, %s330
      %p342 = scmp.eq.s32.totalorder %s32, 1
      %p343 = por %p341, %p342
      %p345 = scmp.ne.s32.totalorder %s330, %s344
      %p346 = scmp.eq.s32.totalorder %s32, 0
      %p347 = por %p345, %p346
      %s349 = sadd.s32 %s348, 1
      %p352 = scmp.eq.s32.totalorder %s26, 1
      %p353 = scmp.ne.s32.totalorder %s348, %s350
      %p354 = scmp.eq.s32.totalorder %s26, 0
      %p355 = por %p353, %p354
      %p356 = scmp.ne.s32.totalorder %s348, %s350
      %p357 = scmp.eq.s32.totalorder %s31, 1
      %p358 = por %p356, %p357
      %p359 = scmp.ne.s32.totalorder %s350, %s351
      %p360 = scmp.eq.s32.totalorder %s31, 0
      %p361 = por %p359, %p360
      %p362 = scmp.ne.s32.totalorder %s350, %s351
      %p363 = scmp.eq.s32.totalorder %s32, 1
      %p364 = por %p362, %p363
      %p366 = scmp.ne.s32.totalorder %s351, %s365
      %p367 = scmp.eq.s32.totalorder %s32, 0
      %p368 = por %p366, %p367
      %s370 = sadd.s32 %s369, 1
      %p373 = scmp.eq.s32.totalorder %s26, 1
      %p374 = scmp.ne.s32.totalorder %s369, %s371
      %p375 = scmp.eq.s32.totalorder %s26, 0
      %p376 = por %p374, %p375
      %p377 = scmp.ne.s32.totalorder %s369, %s371
      %p378 = scmp.eq.s32.totalorder %s31, 1
      %p379 = por %p377, %p378
      %p380 = scmp.ne.s32.totalorder %s371, %s372
      %p381 = scmp.eq.s32.totalorder %s31, 0
      %p382 = por %p380, %p381
      %p383 = scmp.ne.s32.totalorder %s371, %s372
      %p384 = scmp.eq.s32.totalorder %s32, 1
      %p385 = por %p383, %p384
      %p387 = scmp.ne.s32.totalorder %s372, %s386
      %p388 = scmp.eq.s32.totalorder %s32, 0
      %p389 = por %p387, %p388
      %s390 = ssub.s32 %s26, %s33
      %p391 = scmp.eq.s32.totalorder %s390, 0
      %s393 = sadd.s32 %s392, 1
      %s394 = scalar_select %p391, %s392, %s393
      %p397 = pneg %p391
      %p398 = scmp.eq.s32.totalorder %s26, 1
      %p399 = por %p397, %p398
      %p400 = scmp.ne.s32.totalorder %s392, %s395
      %p401 = scmp.eq.s32.totalorder %s26, 0
      %p402 = por %p400, %p401
      %p403 = scmp.ne.s32.totalorder %s392, %s395
      %p404 = scmp.eq.s32.totalorder %s31, 1
      %p405 = por %p403, %p404
      %p406 = scmp.ne.s32.totalorder %s395, %s396
      %p407 = scmp.eq.s32.totalorder %s31, 0
      %p408 = por %p406, %p407
      %p409 = scmp.ne.s32.totalorder %s395, %s396
      %p410 = scmp.eq.s32.totalorder %s32, 1
      %p411 = por %p409, %p410
      %p413 = scmp.ne.s32.totalorder %s396, %s412
      %p414 = scmp.eq.s32.totalorder %s32, 0
      %p415 = por %p413, %p414
      %s416 = ssub.s32 %s26, %s33
      %p417 = scmp.eq.s32.totalorder %s416, 0
      %s419 = sadd.s32 %s418, 1
      %s420 = scalar_select %p417, %s418, %s419
      %p423 = pneg %p417
      %p424 = scmp.eq.s32.totalorder %s26, 1
      %p425 = por %p423, %p424
      %p426 = scmp.ne.s32.totalorder %s418, %s421
      %p427 = scmp.eq.s32.totalorder %s26, 0
      %p428 = por %p426, %p427
      %p429 = scmp.ne.s32.totalorder %s418, %s421
      %p430 = scmp.eq.s32.totalorder %s31, 1
      %p431 = por %p429, %p430
      %p432 = scmp.ne.s32.totalorder %s421, %s422
      %p433 = scmp.eq.s32.totalorder %s31, 0
      %p434 = por %p432, %p433
      %p435 = scmp.ne.s32.totalorder %s421, %s422
      %p436 = scmp.eq.s32.totalorder %s32, 1
      %p437 = por %p435, %p436
      %p439 = scmp.ne.s32.totalorder %s422, %s438
      %p440 = scmp.eq.s32.totalorder %s32, 0
      %p441 = por %p439, %p440
      %s443 = sadd.s32 %s442, 1
      %p446 = scmp.eq.s32.totalorder %s26, 1
      %p447 = scmp.ne.s32.totalorder %s442, %s444
      %p448 = scmp.eq.s32.totalorder %s26, 0
      %p449 = por %p447, %p448
      %p450 = scmp.ne.s32.totalorder %s442, %s444
      %p451 = scmp.eq.s32.totalorder %s31, 1
      %p452 = por %p450, %p451
      %p453 = scmp.ne.s32.totalorder %s444, %s445
      %p454 = scmp.eq.s32.totalorder %s31, 0
      %p455 = por %p453, %p454
      %p456 = scmp.ne.s32.totalorder %s444, %s445
      %p457 = scmp.eq.s32.totalorder %s32, 1
      %p458 = por %p456, %p457
      %p460 = scmp.ne.s32.totalorder %s445, %s459
      %p461 = scmp.eq.s32.totalorder %s32, 0
      %p462 = por %p460, %p461
      %s464 = sadd.s32 %s463, 1
      %p467 = scmp.eq.s32.totalorder %s26, 1
      %p468 = scmp.ne.s32.totalorder %s463, %s465
      %p469 = scmp.eq.s32.totalorder %s26, 0
      %p470 = por %p468, %p469
      %p471 = scmp.ne.s32.totalorder %s463, %s465
      %p472 = scmp.eq.s32.totalorder %s31, 1
      %p473 = por %p471, %p472
      %p474 = scmp.ne.s32.totalorder %s465, %s466
      %p475 = scmp.eq.s32.totalorder %s31, 0
      %p476 = por %p474, %p475
      %p477 = scmp.ne.s32.totalorder %s465, %s466
      %p478 = scmp.eq.s32.totalorder %s32, 1
      %p479 = por %p477, %p478
      %p481 = scmp.ne.s32.totalorder %s466, %s480
      %p482 = scmp.eq.s32.totalorder %s32, 0
      %p483 = por %p481, %p482
      %s484 = ssub.s32 %s26, %s33
      %p485 = scmp.eq.s32.totalorder %s484, 0
      %s487 = sadd.s32 %s486, 1
      %s488 = scalar_select %p485, %s486, %s487
      %p491 = pneg %p485
      %p492 = scmp.eq.s32.totalorder %s26, 1
      %p493 = por %p491, %p492
      %p494 = scmp.ne.s32.totalorder %s486, %s489
      %p495 = scmp.eq.s32.totalorder %s26, 0
      %p496 = por %p494, %p495
      %p497 = scmp.ne.s32.totalorder %s486, %s489
      %p498 = scmp.eq.s32.totalorder %s31, 1
      %p499 = por %p497, %p498
      %p500 = scmp.ne.s32.totalorder %s489, %s490
      %p501 = scmp.eq.s32.totalorder %s31, 0
      %p502 = por %p500, %p501
      %p503 = scmp.ne.s32.totalorder %s489, %s490
      %p504 = scmp.eq.s32.totalorder %s32, 1
      %p505 = por %p503, %p504
      %p507 = scmp.ne.s32.totalorder %s490, %s506
      %p508 = scmp.eq.s32.totalorder %s32, 0
      %p509 = por %p507, %p508
      %p510 = scmp.le.s32.totalorder 1, %s26
      %p511 = scmp.lt.s32.totalorder %s26, 3
      %p512 = pnand %p510, %p511
      %p513 = pneg %p512
      // Predicated region
      $region9: #{_lambda_.1} parent=5 // pred_check
        _
      $region10: #{_lambda_.1} parent=5 // pred_check_branch
        %515 = sbr.rel (%p512) target = $region12
      $region11: #{_lambda_.1} parent=5 // pred_region
        %s516 = ssub.s32 %s26, 1
        // Predicated region
        $region13: #{_lambda_.1} parent=11 // pred_check
          %p517 = pneg %p73
        $region14: #{_lambda_.1} parent=11 // pred_check_branch
          %519 = sbr.rel (%p517) target = $region16
        $region15: #{_lambda_.1} parent=11 // pred_region
          _
        $region16: #{_lambda_.1} parent=11 // pred_fallthru
          _
        // Predicated region
        $region17: #{_lambda_.1} parent=11 // pred_check
          %p520 = pneg %p94
        $region18: #{_lambda_.1} parent=11 // pred_check_branch
          %522 = sbr.rel (%p520) target = $region20
        $region19: #{_lambda_.1} parent=11 // pred_region
          _
        $region20: #{_lambda_.1} parent=11 // pred_fallthru
          _
        // Predicated region
        $region21: #{_lambda_.1} parent=11 // pred_check
          %p523 = pneg %p115
        $region22: #{_lambda_.1} parent=11 // pred_check_branch
          %525 = sbr.rel (%p523) target = $region24
        $region23: #{_lambda_.1} parent=11 // pred_region
          _
        $region24: #{_lambda_.1} parent=11 // pred_fallthru
          _
        // Predicated region
        $region25: #{_lambda_.1} parent=11 // pred_check
          %p526 = pneg %p136
        $region26: #{_lambda_.1} parent=11 // pred_check_branch
          %528 = sbr.rel (%p526) target = $region28
        $region27: #{_lambda_.1} parent=11 // pred_region
          _
        $region28: #{_lambda_.1} parent=11 // pred_fallthru
          _
        // Predicated region
        $region29: #{_lambda_.1} parent=11 // pred_check
          %p529 = pneg %p157
        $region30: #{_lambda_.1} parent=11 // pred_check_branch
          %531 = sbr.rel (%p529) target = $region32
        $region31: #{_lambda_.1} parent=11 // pred_region
          _
        $region32: #{_lambda_.1} parent=11 // pred_fallthru
          _
        // Predicated region
        $region33: #{_lambda_.1} parent=11 // pred_check
          %p532 = pneg %p178
        $region34: #{_lambda_.1} parent=11 // pred_check_branch
          %534 = sbr.rel (%p532) target = $region36
        $region35: #{_lambda_.1} parent=11 // pred_region
          _
        $region36: #{_lambda_.1} parent=11 // pred_fallthru
          _
        // Predicated region
        $region37: #{_lambda_.1} parent=11 // pred_check
          %p535 = pneg %p225
        $region38: #{_lambda_.1} parent=11 // pred_check_branch
          %537 = sbr.rel (%p535) target = $region40
        $region39: #{_lambda_.1} parent=11 // pred_region
          _
        $region40: #{_lambda_.1} parent=11 // pred_fallthru
          _
        // Predicated region
        $region41: #{_lambda_.1} parent=11 // pred_check
          %p538 = pneg %p246
        $region42: #{_lambda_.1} parent=11 // pred_check_branch
          %540 = sbr.rel (%p538) target = $region44
        $region43: #{_lambda_.1} parent=11 // pred_region
          _
        $region44: #{_lambda_.1} parent=11 // pred_fallthru
          _
        // Predicated region
        $region45: #{_lambda_.1} parent=11 // pred_check
          %p541 = pneg %p319
        $region46: #{_lambda_.1} parent=11 // pred_check_branch
          %543 = sbr.rel (%p541) target = $region48
        $region47: #{_lambda_.1} parent=11 // pred_region
          _
        $region48: #{_lambda_.1} parent=11 // pred_fallthru
          _
        // Predicated region
        $region49: #{_lambda_.1} parent=11 // pred_check
          %p544 = pneg %p340
        $region50: #{_lambda_.1} parent=11 // pred_check_branch
          %546 = sbr.rel (%p544) target = $region52
        $region51: #{_lambda_.1} parent=11 // pred_region
          _
        $region52: #{_lambda_.1} parent=11 // pred_fallthru
          _
        // Predicated region
        $region53: #{_lambda_.1} parent=11 // pred_check
          %p547 = pneg %p361
        $region54: #{_lambda_.1} parent=11 // pred_check_branch
          %549 = sbr.rel (%p547) target = $region56
        $region55: #{_lambda_.1} parent=11 // pred_region
          _
        $region56: #{_lambda_.1} parent=11 // pred_fallthru
          _
        // Predicated region
        $region57: #{_lambda_.1} parent=11 // pred_check
          %p550 = pneg %p382
        $region58: #{_lambda_.1} parent=11 // pred_check_branch
          %552 = sbr.rel (%p550) target = $region60
        $region59: #{_lambda_.1} parent=11 // pred_region
          _
        $region60: #{_lambda_.1} parent=11 // pred_fallthru
          _
        // Predicated region
        $region61: #{_lambda_.1} parent=11 // pred_check
          %p553 = pneg %p455
        $region62: #{_lambda_.1} parent=11 // pred_check_branch
          %555 = sbr.rel (%p553) target = $region64
        $region63: #{_lambda_.1} parent=11 // pred_region
          _
        $region64: #{_lambda_.1} parent=11 // pred_fallthru
          _
        // Predicated region
        $region65: #{_lambda_.1} parent=11 // pred_check
          %p556 = pneg %p476
        $region66: #{_lambda_.1} parent=11 // pred_check_branch
          %558 = sbr.rel (%p556) target = $region68
        $region67: #{_lambda_.1} parent=11 // pred_region
          _
        $region68: #{_lambda_.1} parent=11 // pred_fallthru
          _
      $region12: #{_lambda_.1} parent=5 // pred_fallthru
        _
      %p559 = scmp.lt.s32.totalorder %s26, 2
      // Predicated region
      $region69: #{_lambda_.1} parent=5 // pred_check
        %p560 = pneg %p559
      $region70: #{_lambda_.1} parent=5 // pred_check_branch
        %562 = sbr.rel (%p560) target = $region72
      $region71: #{_lambda_.1} parent=5 // pred_region
        // Predicated region
        $region73: #{_lambda_.1} parent=71 // pred_check
          %p563 = pneg %p46
        $region74: #{_lambda_.1} parent=71 // pred_check_branch
          %565 = sbr.rel (%p563) target = $region76
        $region75: #{_lambda_.1} parent=71 // pred_region
          %s566 = sand.u32 %s36, 1
          %s567 = sand.u32 %s36, 1
          %s568 = smul.addr %s567, 16
          %s569 = scalar_lea.vmem [#allocation2], %s568
          %s570 = smul.addr %s26, 8
          %s571 = scalar_lea.vmem %s0, %s570
          // Predicated region
          $region77: #{_lambda_.1} parent=75 // pred_check
            _
          $region78: #{_lambda_.1} parent=75 // pred_check_branch
            %573 = sbr.rel (0) target = $region80
          $region79: #{_lambda_.1} parent=75 // pred_region
            // Predicated region
            $region81: #{_lambda_.1} parent=79 // pred_check
              _
            $region82: #{_lambda_.1} parent=79 // pred_check_branch
              %575 = sbr.rel (0) target = $region84
            $region83: #{_lambda_.1} parent=79 // pred_region
              // Predicated region
              $region96: #{_lambda_.1} parent=83 // pred_check
                _
              $region97: #{_lambda_.1} parent=83 // pred_check_branch
                %592 = sbr.rel (0) target = $region99
              $region98: #{_lambda_.1} parent=83 // pred_region
                loop: start=0, step=1, limit=1
                $region100: #{_lambda_.1} parent=98 // loop_pre_header
                  _
                $region101: #{_lambda_.1} parent=98 // loop_header
                  %s594 = sphi 0, %s598
                  %p595 = scmp.ge.s32.totalorder %s594, 1
                  %s599 = sphi %s571, %s571
                  %s600 = sphi %s569, %s569
                $region102: #{_lambda_.1} parent=98 // loop_header_branch
                  %597 = sbr.rel (%p595) target = $region106
                $region103: #{_lambda_.1} parent=98 // loop_body
                  %v601 = vld [vmem:[%s599] sm:$0xff]
                  %602 = vst [vmem:[%s600] sm:$0xff] %v601
                  %v603 = vld [vmem:[%s599 + $0x10] sm:$0xff]
                  %604 = vst [vmem:[%s600 + $0x8] sm:$0xff] %v603
                $region104: #{_lambda_.1} parent=98 // loop_footer
                  %s598 = sadd.s32 1, %s594
                $region105: #{_lambda_.1} parent=98 // loop_footer_branch
                  %593 = sbr.rel target = $region101
                $region106: #{_lambda_.1} parent=98 // loop_exit
                  _
              $region99: #{_lambda_.1} parent=83 // pred_fallthru
                _
              // Predicated region
              $region107: #{_lambda_.1} parent=83 // pred_check
                _
              $region108: #{_lambda_.1} parent=83 // pred_check_branch
                %606 = sbr.rel target = $region110
              $region109: #{_lambda_.1} parent=83 // pred_region
                _
              $region110: #{_lambda_.1} parent=83 // pred_fallthru
                _
            $region84: #{_lambda_.1} parent=79 // pred_fallthru
              _
            // Predicated region
            $region85: #{_lambda_.1} parent=79 // pred_check
              _
            $region86: #{_lambda_.1} parent=79 // pred_check_branch
              %577 = sbr.rel target = $region88
            $region87: #{_lambda_.1} parent=79 // pred_region
              loop: start=0, step=1, limit=1
              $region89: #{_lambda_.1} parent=87 // loop_pre_header
                _
              $region90: #{_lambda_.1} parent=87 // loop_header
                %s580 = sphi 0, %s584
                %p581 = scmp.ge.s32.totalorder %s580, 1
                %s585 = sphi %s571, %s571
                %s586 = sphi %s569, %s569
              $region91: #{_lambda_.1} parent=87 // loop_header_branch
                %583 = sbr.rel (%p581) target = $region95
              $region92: #{_lambda_.1} parent=87 // loop_body
                %v587 = vld [vmem:[%s585] sm:$0xff]
                %588 = vst [vmem:[%s586] sm:$0xff] %v587
                %v589 = vld [vmem:[%s585 + $0x10] sm:$0xff]
                %590 = vst [vmem:[%s586 + $0x8] sm:$0xff] %v589
              $region93: #{_lambda_.1} parent=87 // loop_footer
                %s584 = sadd.s32 1, %s580
              $region94: #{_lambda_.1} parent=87 // loop_footer_branch
                %579 = sbr.rel target = $region90
              $region95: #{_lambda_.1} parent=87 // loop_exit
                _
            $region88: #{_lambda_.1} parent=79 // pred_fallthru
              _
          $region80: #{_lambda_.1} parent=75 // pred_fallthru
            _
          %607 = vnop
        $region76: #{_lambda_.1} parent=71 // pred_fallthru
          _
        // Predicated region
        $region111: #{_lambda_.1} parent=71 // pred_check
          %p608 = pneg %p198
        $region112: #{_lambda_.1} parent=71 // pred_check_branch
          %610 = sbr.rel (%p608) target = $region114
        $region113: #{_lambda_.1} parent=71 // pred_region
          %p611 = scmp.lt.s32.totalorder %s26, 1
          %s612 = scalar_select %p611, %s26, 1
          %s613 = smul.addr %s612, 4
          %s614 = smul.addr %s613, 8
          %s615 = scalar_lea.vmem %s7, %s614
        $region114: #{_lambda_.1} parent=71 // pred_fallthru
          _
        // Predicated region
        $region115: #{_lambda_.1} parent=71 // pred_check
          %p616 = pneg %p266
        $region116: #{_lambda_.1} parent=71 // pred_check_branch
          %618 = sbr.rel (%p616) target = $region118
        $region117: #{_lambda_.1} parent=71 // pred_region
          %p619 = scmp.lt.s32.totalorder %s26, 1
          %s620 = scalar_select %p619, %s26, 1
          %s621 = smul.addr %s620, 8
          %s622 = scalar_lea.vmem %s10, %s621
        $region118: #{_lambda_.1} parent=71 // pred_fallthru
          _
        // Predicated region
        $region119: #{_lambda_.1} parent=71 // pred_check
          %p623 = pneg %p292
        $region120: #{_lambda_.1} parent=71 // pred_check_branch
          %625 = sbr.rel (%p623) target = $region122
        $region121: #{_lambda_.1} parent=71 // pred_region
          %p626 = scmp.lt.s32.totalorder %s26, 1
          %s627 = scalar_select %p626, %s26, 1
          %s628 = smul.addr %s627, 8
          %s629 = scalar_lea.vmem %s11, %s628
        $region122: #{_lambda_.1} parent=71 // pred_fallthru
          _
        // Predicated region
        $region123: #{_lambda_.1} parent=71 // pred_check
          %p630 = pneg %p402
        $region124: #{_lambda_.1} parent=71 // pred_check_branch
          %632 = sbr.rel (%p630) target = $region126
        $region125: #{_lambda_.1} parent=71 // pred_region
          %p633 = scmp.lt.s32.totalorder %s26, 1
          %s634 = scalar_select %p633, %s26, 1
          %s635 = smul.addr %s634, 8
          %s636 = scalar_lea.vmem %s16, %s635
        $region126: #{_lambda_.1} parent=71 // pred_fallthru
          _
        // Predicated region
        $region127: #{_lambda_.1} parent=71 // pred_check
          %p637 = pneg %p428
        $region128: #{_lambda_.1} parent=71 // pred_check_branch
          %639 = sbr.rel (%p637) target = $region130
        $region129: #{_lambda_.1} parent=71 // pred_region
          %p640 = scmp.lt.s32.totalorder %s26, 1
          %s641 = scalar_select %p640, %s26, 1
          %s642 = smul.addr %s641, 8
          %s643 = scalar_lea.vmem %s17, %s642
        $region130: #{_lambda_.1} parent=71 // pred_fallthru
          _
      $region72: #{_lambda_.1} parent=5 // pred_fallthru
        _
      %p644 = scmp.le.s32.totalorder 1, %s26
      %p645 = scmp.lt.s32.totalorder %s26, 3
      %p646 = pnand %p644, %p645
      %p647 = pneg %p646
      // Predicated region
      $region131: #{_lambda_.1} parent=5 // pred_check
        _
      $region132: #{_lambda_.1} parent=5 // pred_check_branch
        %649 = sbr.rel (%p646) target = $region134
      $region133: #{_lambda_.1} parent=5 // pred_region
        %s650 = ssub.s32 %s26, 1
        %s651 = sand.u32 %s39, 1
        %s652 = sand.u32 %s39, 1
        %s653 = smul.addr %s652, 16
        %s654 = scalar_lea.vmem [#allocation2], %s653
        // Predicated region
        $region135: #{_lambda_.1} parent=133 // pred_check
          %p655 = pneg %p52
        $region136: #{_lambda_.1} parent=133 // pred_check_branch
          %657 = sbr.rel (%p655) target = $region138
        $region137: #{_lambda_.1} parent=133 // pred_region
          _
        $region138: #{_lambda_.1} parent=133 // pred_fallthru
          _
        %s658 = sand.u32 %s39, 1
        %s659 = sand.u32 %s39, 1
        %s660 = smul.addr %s659, 16
        %s661 = scalar_lea.vmem [#allocation2], %s660
        %p662 = pneg %p52
        %p663 = pneg %p49
        %p664 = pneg %p73
        %p665 = pneg %p70
        %p666 = pneg %p94
        %p667 = pneg %p91
        %p668 = pneg %p115
        %p669 = pneg %p112
        %p670 = pneg %p136
        %p671 = pneg %p133
        %p672 = pneg %p157
        %p673 = pneg %p154
        %p674 = pneg %p178
        %p675 = pneg %p175
        %p676 = scmp.lt.s32.totalorder %s31, 1
        %s677 = scalar_select %p676, %s31, 1
        %s678 = smul.addr %s677, 4
        %s679 = smul.addr %s678, 8
        %s680 = scalar_lea.vmem %s7, %s679
        %p681 = pneg %p204
        %p682 = pneg %p201
        %p683 = pneg %p225
        %p684 = pneg %p222
        %p685 = pneg %p246
        %p686 = pneg %p243
        %p687 = scmp.lt.s32.totalorder %s31, 1
        %s688 = scalar_select %p687, %s31, 1
        %s689 = smul.addr %s688, 8
        %s690 = scalar_lea.vmem %s10, %s689
        %p691 = pneg %p272
        %p692 = pneg %p269
        %p693 = scmp.lt.s32.totalorder %s31, 1
        %s694 = scalar_select %p693, %s31, 1
        %s695 = smul.addr %s694, 8
        %s696 = scalar_lea.vmem %s11, %s695
        %p697 = pneg %p298
        %p698 = pneg %p295
        %p699 = pneg %p319
        %p700 = pneg %p316
        %p701 = pneg %p340
        %p702 = pneg %p337
        %p703 = pneg %p361
        %p704 = pneg %p358
        %p705 = pneg %p382
        %p706 = pneg %p379
        %p707 = scmp.lt.s32.totalorder %s31, 1
        %s708 = scalar_select %p707, %s31, 1
        %s709 = smul.addr %s708, 8
        %s710 = scalar_lea.vmem %s16, %s709
        %p711 = pneg %p408
        %p712 = pneg %p405
        %p713 = scmp.lt.s32.totalorder %s31, 1
        %s714 = scalar_select %p713, %s31, 1
        %s715 = smul.addr %s714, 8
        %s716 = scalar_lea.vmem %s17, %s715
        %p717 = pneg %p434
        %p718 = pneg %p431
        %p719 = pneg %p455
        %p720 = pneg %p452
        %p721 = pneg %p476
        %p722 = pneg %p473
        %p723 = pneg %p502
        %p724 = pneg %p499
        %s725 = sand.u32 %s489, 1
        %s726 = sand.u32 %s489, 1
        %s727 = smul.addr %s726, 16
        %s728 = scalar_lea.vmem [#allocation3], %s727
        %p729 = scmp.lt.s32.totalorder %s31, 1
        %s730 = scalar_select %p729, %s31, 1
        %s731 = smul.addr %s730, 4
        %s732 = smul.addr %s731, 8
        %s733 = scalar_lea.vmem %s7, %s732
        %p734 = scmp.lt.s32.totalorder %s31, 1
        %s735 = scalar_select %p734, %s31, 1
        %s736 = smul.addr %s735, 8
        %s737 = scalar_lea.vmem %s10, %s736
        %p738 = scmp.lt.s32.totalorder %s31, 1
        %s739 = scalar_select %p738, %s31, 1
        %s740 = smul.addr %s739, 8
        %s741 = scalar_lea.vmem %s11, %s740
        %p742 = scmp.lt.s32.totalorder %s31, 1
        %s743 = scalar_select %p742, %s31, 1
        %s744 = smul.addr %s743, 8
        %s745 = scalar_lea.vmem %s16, %s744
        %p746 = scmp.lt.s32.totalorder %s31, 1
        %s747 = scalar_select %p746, %s31, 1
        %s748 = smul.addr %s747, 8
        %s749 = scalar_lea.vmem %s17, %s748
        %v750 = vld [vmem:[%s654] sm:$0xff]
        %v751 = vld [vmem:[%s654 + $0x8] sm:$0xff]
        %v752 = vld [vmem:[%s1] sm:$0xff]
        %v753 = vld [vmem:[%s1 + $0x8] sm:$0xff]
        %v754 = vld [vmem:[%s1 + $0x10] sm:$0xff]
        %v755 = vld [vmem:[%s1 + $0x18] sm:$0xff]
        %v756 = vld [vmem:[%s2] sm:$0x1]
        %v758 = vlaneseq
        %v759 = vshrl.u32 %v758, 7
        %v760 = vsub.s32 0, %v759
        %v761 = vrot.slane %v756, %v760
        %vm763 = vcmask 261120
        %v765 = vsel %vm763, %v750, 0
        %v768 = vsel %vm763, %v751, 0
        %770 = vmatprep.subr.mxu0 0.0
        %771 = vmatpush1.msra.mxu0 %v752
        %772 = vmatprep.subr.mxu0 0.0
        %773 = vmatpush1.msra.mxu0 %v753
        %774 = vmatprep.subr.mxu0 0.0
        %775 = vmatpush1.msra.mxu0 %v754
        %776 = vmatprep.subr.mxu0 0.0
        %777 = vmatpush1.msra.mxu0 %v755
        %778 = vmatprep.subr.mxu0 0.0
        %779 = vmatpush1.msra.mxu0 0.0
        %780 = vmatprep.subr.mxu0 0.0
        %781 = vmatpush1.msra.mxu0 0.0
        %782 = vmatprep.subr.mxu0 0.0
        %783 = vmatpush1.msra.mxu0 0.0
        %784 = vmatprep.subr.mxu0 0.0
        %785 = vmatpush1.msra.mxu0 0.0
        %786 = vmatprep.subr.mxu0 0.0
        %787 = vmatpush1.msra.mxu0 0.0
        %788 = vmatprep.subr.mxu0 0.0
        %789 = vmatpush1.msra.mxu0 0.0
        %790 = vmatprep.subr.mxu0 0.0
        %791 = vmatpush1.msra.mxu0 0.0
        %792 = vmatprep.subr.mxu0 0.0
        %793 = vmatpush1.msra.mxu0 0.0
        %794 = vmatprep.subr.mxu0 0.0
        %795 = vmatpush1.msra.mxu0 0.0
        %796 = vmatprep.subr.mxu0 0.0
        %797 = vmatpush1.msra.mxu0 0.0
        %798 = vmatprep.subr.mxu0 0.0
        %799 = vmatpush1.msra.mxu0 0.0
        %800 = vmatprep.subr.mxu0 0.0
        %801 = vmatpush1.msra.mxu0 0.0
        %802 = vmatprep.subr.mxu0 0.0
        %803 = vmatpush1.msra.mxu0 0.0
        %804 = vmatprep.subr.mxu0 0.0
        %805 = vmatpush1.msra.mxu0 0.0
        %806 = vmatprep.subr.mxu0 0.0
        %807 = vmatpush1.msra.mxu0 0.0
        %808 = vmatprep.subr.mxu0 0.0
        %809 = vmatpush1.msra.mxu0 0.0
        %810 = vmatprep.subr.mxu0 0.0
        %811 = vmatpush1.msra.mxu0 0.0
        %812 = vmatprep.subr.mxu0 0.0
        %813 = vmatpush1.msra.mxu0 0.0
        %814 = vmatprep.subr.mxu0 0.0
        %815 = vmatpush1.msra.mxu0 0.0
        %816 = vmatprep.subr.mxu0 0.0
        %817 = vmatpush1.msra.mxu0 0.0
        %818 = vmatprep.subr.mxu0 0.0
        %819 = vmatpush1.msra.mxu0 0.0
        %820 = vmatprep.subr.mxu0 0.0
        %821 = vmatpush1.msra.mxu0 0.0
        %822 = vmatprep.subr.mxu0 0.0
        %823 = vmatpush1.msra.mxu0 0.0
        %824 = vmatprep.subr.mxu0 0.0
        %825 = vmatpush1.msra.mxu0 0.0
        %826 = vmatprep.subr.mxu0 0.0
        %827 = vmatpush1.msra.mxu0 0.0
        %828 = vmatprep.subr.mxu0 0.0
        %829 = vmatpush1.msra.mxu0 0.0
        %830 = vmatprep.subr.mxu0 0.0
        %831 = vmatpush1.msra.mxu0 0.0
        %832 = vmatprep.subr.mxu0 0.0
        %833 = vmatpush1.msra.mxu0 0.0
        %834 = vmatprep.mubr.f32.mxu0 0.0
        %835 = vmatmul.mubr.f32.gmra.mrb[0].mxu0 %v765
        %v836 = vpop.f32.mrb[0].mxu0
        %v837 = vadd.f32 %v761, %v836
        %v838 = vpop.f32.mrb[0].mxu0
        %839 = vmatprep.mubr.f32.mxu0 0.0
        %840 = vmatmul.mubr.f32.gmra.mrb[0].mxu0 %v768
        %v841 = vpop.f32.mrb[0].mxu0
        %v842 = vadd.f32 %v761, %v841
        %v843 = vpop.f32.mrb[0].mxu0
        %844 = vdwg.mxu0
        %v845 = vld [vmem:[%s3] sm:$0xff]
        %v846 = vld [vmem:[%s3 + $0x8] sm:$0xff]
        %v847 = vld [vmem:[%s3 + $0x10] sm:$0xff]
        %v848 = vld [vmem:[%s3 + $0x18] sm:$0xff]
        %v849 = vld [vmem:[%s4] sm:$0x1]
        %v851 = vlaneseq
        %v852 = vshrl.u32 %v851, 7
        %v853 = vsub.s32 0, %v852
        %v854 = vrot.slane %v849, %v853
        %856 = vmatprep.subr.mxu0 0.0
        %857 = vmatpush1.msra.mxu0 %v845
        %858 = vmatprep.subr.mxu0 0.0
        %859 = vmatpush1.msra.mxu0 %v846
        %860 = vmatprep.subr.mxu0 0.0
        %861 = vmatpush1.msra.mxu0 %v847
        %862 = vmatprep.subr.mxu0 0.0
        %863 = vmatpush1.msra.mxu0 %v848
        %864 = vmatprep.subr.mxu0 0.0
        %865 = vmatpush1.msra.mxu0 0.0
        %866 = vmatprep.subr.mxu0 0.0
        %867 = vmatpush1.msra.mxu0 0.0
        %868 = vmatprep.subr.mxu0 0.0
        %869 = vmatpush1.msra.mxu0 0.0
        %870 = vmatprep.subr.mxu0 0.0
        %871 = vmatpush1.msra.mxu0 0.0
        %872 = vmatprep.subr.mxu0 0.0
        %873 = vmatpush1.msra.mxu0 0.0
        %874 = vmatprep.subr.mxu0 0.0
        %875 = vmatpush1.msra.mxu0 0.0
        %876 = vmatprep.subr.mxu0 0.0
        %877 = vmatpush1.msra.mxu0 0.0
        %878 = vmatprep.subr.mxu0 0.0
        %879 = vmatpush1.msra.mxu0 0.0
        %880 = vmatprep.subr.mxu0 0.0
        %881 = vmatpush1.msra.mxu0 0.0
        %882 = vmatprep.subr.mxu0 0.0
        %883 = vmatpush1.msra.mxu0 0.0
        %884 = vmatprep.subr.mxu0 0.0
        %885 = vmatpush1.msra.mxu0 0.0
        %886 = vmatprep.subr.mxu0 0.0
        %887 = vmatpush1.msra.mxu0 0.0
        %888 = vmatprep.subr.mxu0 0.0
        %889 = vmatpush1.msra.mxu0 0.0
        %890 = vmatprep.subr.mxu0 0.0
        %891 = vmatpush1.msra.mxu0 0.0
        %892 = vmatprep.subr.mxu0 0.0
        %893 = vmatpush1.msra.mxu0 0.0
        %894 = vmatprep.subr.mxu0 0.0
        %895 = vmatpush1.msra.mxu0 0.0
        %896 = vmatprep.subr.mxu0 0.0
        %897 = vmatpush1.msra.mxu0 0.0
        %898 = vmatprep.subr.mxu0 0.0
        %899 = vmatpush1.msra.mxu0 0.0
        %900 = vmatprep.subr.mxu0 0.0
        %901 = vmatpush1.msra.mxu0 0.0
        %902 = vmatprep.subr.mxu0 0.0
        %903 = vmatpush1.msra.mxu0 0.0
        %904 = vmatprep.subr.mxu0 0.0
        %905 = vmatpush1.msra.mxu0 0.0
        %906 = vmatprep.subr.mxu0 0.0
        %907 = vmatpush1.msra.mxu0 0.0
        %908 = vmatprep.subr.mxu0 0.0
        %909 = vmatpush1.msra.mxu0 0.0
        %910 = vmatprep.subr.mxu0 0.0
        %911 = vmatpush1.msra.mxu0 0.0
        %912 = vmatprep.subr.mxu0 0.0
        %913 = vmatpush1.msra.mxu0 0.0
        %914 = vmatprep.subr.mxu0 0.0
        %915 = vmatpush1.msra.mxu0 0.0
        %916 = vmatprep.subr.mxu0 0.0
        %917 = vmatpush1.msra.mxu0 0.0
        %918 = vmatprep.subr.mxu0 0.0
        %919 = vmatpush1.msra.mxu0 0.0
        %920 = vmatprep.mubr.f32.mxu0 0.0
        %921 = vmatmul.mubr.f32.gmra.mrb[0].mxu0 %v765
        %v922 = vpop.f32.mrb[0].mxu0
        %v923 = vadd.f32 %v854, %v922
        %v924 = vpop.f32.mrb[0].mxu0
        %925 = vmatprep.mubr.f32.mxu0 0.0
        %926 = vmatmul.mubr.f32.gmra.mrb[0].mxu0 %v768
        %v927 = vpop.f32.mrb[0].mxu0
        %v928 = vadd.f32 %v854, %v927
        %v929 = vpop.f32.mrb[0].mxu0
        %930 = vdwg.mxu0
        %v931 = vld [vmem:[%s5] sm:$0xff]
        %v932 = vld [vmem:[%s5 + $0x8] sm:$0xff]
        %v933 = vld [vmem:[%s5 + $0x10] sm:$0xff]
        %v934 = vld [vmem:[%s5 + $0x18] sm:$0xff]
        %v935 = vld [vmem:[%s6] sm:$0x1]
        %v937 = vlaneseq
        %v938 = vshrl.u32 %v937, 7
        %v939 = vsub.s32 0, %v938
        %v940 = vrot.slane %v935, %v939
        %942 = vmatprep.subr.mxu0 0.0
        %943 = vmatpush1.msra.mxu0 %v931
        %944 = vmatprep.subr.mxu0 0.0
        %945 = vmatpush1.msra.mxu0 %v932
        %946 = vmatprep.subr.mxu0 0.0
        %947 = vmatpush1.msra.mxu0 %v933
        %948 = vmatprep.subr.mxu0 0.0
        %949 = vmatpush1.msra.mxu0 %v934
        %950 = vmatprep.subr.mxu0 0.0
        %951 = vmatpush1.msra.mxu0 0.0
        %952 = vmatprep.subr.mxu0 0.0
        %953 = vmatpush1.msra.mxu0 0.0
        %954 = vmatprep.subr.mxu0 0.0
        %955 = vmatpush1.msra.mxu0 0.0
        %956 = vmatprep.subr.mxu0 0.0
        %957 = vmatpush1.msra.mxu0 0.0
        %958 = vmatprep.subr.mxu0 0.0
        %959 = vmatpush1.msra.mxu0 0.0
        %960 = vmatprep.subr.mxu0 0.0
        %961 = vmatpush1.msra.mxu0 0.0
        %962 = vmatprep.subr.mxu0 0.0
        %963 = vmatpush1.msra.mxu0 0.0
        %964 = vmatprep.subr.mxu0 0.0
        %965 = vmatpush1.msra.mxu0 0.0
        %966 = vmatprep.subr.mxu0 0.0
        %967 = vmatpush1.msra.mxu0 0.0
        %968 = vmatprep.subr.mxu0 0.0
        %969 = vmatpush1.msra.mxu0 0.0
        %970 = vmatprep.subr.mxu0 0.0
        %971 = vmatpush1.msra.mxu0 0.0
        %972 = vmatprep.subr.mxu0 0.0
        %973 = vmatpush1.msra.mxu0 0.0
        %974 = vmatprep.subr.mxu0 0.0
        %975 = vmatpush1.msra.mxu0 0.0
        %976 = vmatprep.subr.mxu0 0.0
        %977 = vmatpush1.msra.mxu0 0.0
        %978 = vmatprep.subr.mxu0 0.0
        %979 = vmatpush1.msra.mxu0 0.0
        %980 = vmatprep.subr.mxu0 0.0
        %981 = vmatpush1.msra.mxu0 0.0
        %982 = vmatprep.subr.mxu0 0.0
        %983 = vmatpush1.msra.mxu0 0.0
        %984 = vmatprep.subr.mxu0 0.0
        %985 = vmatpush1.msra.mxu0 0.0
        %986 = vmatprep.subr.mxu0 0.0
        %987 = vmatpush1.msra.mxu0 0.0
        %988 = vmatprep.subr.mxu0 0.0
        %989 = vmatpush1.msra.mxu0 0.0
        %990 = vmatprep.subr.mxu0 0.0
        %991 = vmatpush1.msra.mxu0 0.0
        %992 = vmatprep.subr.mxu0 0.0
        %993 = vmatpush1.msra.mxu0 0.0
        %994 = vmatprep.subr.mxu0 0.0
        %995 = vmatpush1.msra.mxu0 0.0
        %996 = vmatprep.subr.mxu0 0.0
        %997 = vmatpush1.msra.mxu0 0.0
        %998 = vmatprep.subr.mxu0 0.0
        %999 = vmatpush1.msra.mxu0 0.0
        %1000 = vmatprep.subr.mxu0 0.0
        %1001 = vmatpush1.msra.mxu0 0.0
        %1002 = vmatprep.subr.mxu0 0.0
        %1003 = vmatpush1.msra.mxu0 0.0
        %1004 = vmatprep.subr.mxu0 0.0
        %1005 = vmatpush1.msra.mxu0 0.0
        %1006 = vmatprep.mubr.f32.mxu0 0.0
        %1007 = vmatmul.mubr.f32.gmra.mrb[0].mxu0 %v765
        %v1008 = vpop.f32.mrb[0].mxu0
        %v1009 = vadd.f32 %v940, %v1008
        %v1010 = vpop.f32.mrb[0].mxu0
        %1011 = vmatprep.mubr.f32.mxu0 0.0
        %1012 = vmatmul.mubr.f32.gmra.mrb[0].mxu0 %v768
        %v1013 = vpop.f32.mrb[0].mxu0
        %v1014 = vadd.f32 %v940, %v1013
        %v1015 = vpop.f32.mrb[0].mxu0
        %1016 = vdwg.mxu0
        %v1018 = vsel %vm763, %v837, 0
        %v1021 = vsel %vm763, %v923, 0
        %1023 = vmatprep.subr.mxu0 0.0
        %1024 = vmatpush1.xpose.msra.mxu0 %v1021
        %1025 = vmatprep.subr.mxu0 0.0
        %1026 = vmatpush1.xpose.msra.mxu0 0.0
        %1027 = vmatprep.subr.mxu0 0.0
        %1028 = vmatpush1.xpose.msra.mxu0 0.0
        %1029 = vmatprep.subr.mxu0 0.0
        %1030 = vmatpush1.xpose.msra.mxu0 0.0
        %1031 = vmatprep.subr.mxu0 0.0
        %1032 = vmatpush1.xpose.msra.mxu0 0.0
        %1033 = vmatprep.subr.mxu0 0.0
        %1034 = vmatpush1.xpose.msra.mxu0 0.0
        %1035 = vmatprep.subr.mxu0 0.0
        %1036 = vmatpush1.xpose.msra.mxu0 0.0
        %1037 = vmatprep.subr.mxu0 0.0
        %1038 = vmatpush1.xpose.msra.mxu0 0.0
        %1039 = vmatprep.subr.mxu0 0.0
        %1040 = vmatpush1.xpose.msra.mxu0 0.0
        %1041 = vmatprep.subr.mxu0 0.0
        %1042 = vmatpush1.xpose.msra.mxu0 0.0
        %1043 = vmatprep.subr.mxu0 0.0
        %1044 = vmatpush1.xpose.msra.mxu0 0.0
        %1045 = vmatprep.subr.mxu0 0.0
        %1046 = vmatpush1.xpose.msra.mxu0 0.0
        %1047 = vmatprep.subr.mxu0 0.0
        %1048 = vmatpush1.xpose.msra.mxu0 0.0
        %1049 = vmatprep.subr.mxu0 0.0
        %1050 = vmatpush1.xpose.msra.mxu0 0.0
        %1051 = vmatprep.subr.mxu0 0.0
        %1052 = vmatpush1.xpose.msra.mxu0 0.0
        %1053 = vmatprep.subr.mxu0 0.0
        %1054 = vmatpush1.xpose.msra.mxu0 0.0
        %1055 = vmatprep.subr.mxu0 0.0
        %1056 = vmatpush1.xpose.msra.mxu0 0.0
        %1057 = vmatprep.subr.mxu0 0.0
        %1058 = vmatpush1.xpose.msra.mxu0 0.0
        %1059 = vmatprep.subr.mxu0 0.0
        %1060 = vmatpush1.xpose.msra.mxu0 0.0
        %1061 = vmatprep.subr.mxu0 0.0
        %1062 = vmatpush1.xpose.msra.mxu0 0.0
        %1063 = vmatprep.subr.mxu0 0.0
        %1064 = vmatpush1.xpose.msra.mxu0 0.0
        %1065 = vmatprep.subr.mxu0 0.0
        %1066 = vmatpush1.xpose.msra.mxu0 0.0
        %1067 = vmatprep.subr.mxu0 0.0
        %1068 = vmatpush1.xpose.msra.mxu0 0.0
        %1069 = vmatprep.subr.mxu0 0.0
        %1070 = vmatpush1.xpose.msra.mxu0 0.0
        %1071 = vmatprep.subr.mxu0 0.0
        %1072 = vmatpush1.xpose.msra.mxu0 0.0
        %1073 = vmatprep.subr.mxu0 0.0
        %1074 = vmatpush1.xpose.msra.mxu0 0.0
        %1075 = vmatprep.subr.mxu0 0.0
        %1076 = vmatpush1.xpose.msra.mxu0 0.0
        %1077 = vmatprep.subr.mxu0 0.0
        %1078 = vmatpush1.xpose.msra.mxu0 0.0
        %1079 = vmatprep.subr.mxu0 0.0
        %1080 = vmatpush1.xpose.msra.mxu0 0.0
        %1081 = vmatprep.subr.mxu0 0.0
        %1082 = vmatpush1.xpose.msra.mxu0 0.0
        %1083 = vmatprep.subr.mxu0 0.0
        %1084 = vmatpush1.xpose.msra.mxu0 0.0
        %1085 = vmatprep.subr.mxu0 0.0
        %1086 = vmatpush1.xpose.msra.mxu0 0.0
        %1087 = vmatprep.mubr.f32.mxu0 0.0
        %1088 = vmatmul.mubr.f32.gmra.mrb[0].mxu0 %v1018
        %v1089 = vpop.f32.mrb[0].mxu0
        %v1090 = vadd.f32 0.0, %v1089
        %v1091 = vpop.f32.mrb[0].mxu0
        %1092 = vdwg.mxu0
        %v1094 = vsel %vm763, %v842, 0
        %v1097 = vsel %vm763, %v928, 0
        %1099 = vmatprep.subr.mxu0 0.0
        %1100 = vmatpush1.xpose.msra.mxu0 %v1097
        %1101 = vmatprep.subr.mxu0 0.0
        %1102 = vmatpush1.xpose.msra.mxu0 0.0
        %1103 = vmatprep.subr.mxu0 0.0
        %1104 = vmatpush1.xpose.msra.mxu0 0.0
        %1105 = vmatprep.subr.mxu0 0.0
        %1106 = vmatpush1.xpose.msra.mxu0 0.0
        %1107 = vmatprep.subr.mxu0 0.0
        %1108 = vmatpush1.xpose.msra.mxu0 0.0
        %1109 = vmatprep.subr.mxu0 0.0
        %1110 = vmatpush1.xpose.msra.mxu0 0.0
        %1111 = vmatprep.subr.mxu0 0.0
        %1112 = vmatpush1.xpose.msra.mxu0 0.0
        %1113 = vmatprep.subr.mxu0 0.0
        %1114 = vmatpush1.xpose.msra.mxu0 0.0
        %1115 = vmatprep.subr.mxu0 0.0
        %1116 = vmatpush1.xpose.msra.mxu0 0.0
        %1117 = vmatprep.subr.mxu0 0.0
        %1118 = vmatpush1.xpose.msra.mxu0 0.0
        %1119 = vmatprep.subr.mxu0 0.0
        %1120 = vmatpush1.xpose.msra.mxu0 0.0
        %1121 = vmatprep.subr.mxu0 0.0
        %1122 = vmatpush1.xpose.msra.mxu0 0.0
        %1123 = vmatprep.subr.mxu0 0.0
        %1124 = vmatpush1.xpose.msra.mxu0 0.0
        %1125 = vmatprep.subr.mxu0 0.0
        %1126 = vmatpush1.xpose.msra.mxu0 0.0
        %1127 = vmatprep.subr.mxu0 0.0
        %1128 = vmatpush1.xpose.msra.mxu0 0.0
        %1129 = vmatprep.subr.mxu0 0.0
        %1130 = vmatpush1.xpose.msra.mxu0 0.0
        %1131 = vmatprep.subr.mxu0 0.0
        %1132 = vmatpush1.xpose.msra.mxu0 0.0
        %1133 = vmatprep.subr.mxu0 0.0
        %1134 = vmatpush1.xpose.msra.mxu0 0.0
        %1135 = vmatprep.subr.mxu0 0.0
        %1136 = vmatpush1.xpose.msra.mxu0 0.0
        %1137 = vmatprep.subr.mxu0 0.0
        %1138 = vmatpush1.xpose.msra.mxu0 0.0
        %1139 = vmatprep.subr.mxu0 0.0
        %1140 = vmatpush1.xpose.msra.mxu0 0.0
        %1141 = vmatprep.subr.mxu0 0.0
        %1142 = vmatpush1.xpose.msra.mxu0 0.0
        %1143 = vmatprep.subr.mxu0 0.0
        %1144 = vmatpush1.xpose.msra.mxu0 0.0
        %1145 = vmatprep.subr.mxu0 0.0
        %1146 = vmatpush1.xpose.msra.mxu0 0.0
        %1147 = vmatprep.subr.mxu0 0.0
        %1148 = vmatpush1.xpose.msra.mxu0 0.0
        %1149 = vmatprep.subr.mxu0 0.0
        %1150 = vmatpush1.xpose.msra.mxu0 0.0
        %1151 = vmatprep.subr.mxu0 0.0
        %1152 = vmatpush1.xpose.msra.mxu0 0.0
        %1153 = vmatprep.subr.mxu0 0.0
        %1154 = vmatpush1.xpose.msra.mxu0 0.0
        %1155 = vmatprep.subr.mxu0 0.0
        %1156 = vmatpush1.xpose.msra.mxu0 0.0
        %1157 = vmatprep.subr.mxu0 0.0
        %1158 = vmatpush1.xpose.msra.mxu0 0.0
        %1159 = vmatprep.subr.mxu0 0.0
        %1160 = vmatpush1.xpose.msra.mxu0 0.0
        %1161 = vmatprep.subr.mxu0 0.0
        %1162 = vmatpush1.xpose.msra.mxu0 0.0
        %1163 = vmatprep.mubr.f32.mxu0 0.0
        %1164 = vmatmul.mubr.f32.gmra.mrb[0].mxu0 %v1094
        %v1165 = vpop.f32.mrb[0].mxu0
        %v1166 = vadd.f32 0.0, %v1165
        %v1167 = vpop.f32.mrb[0].mxu0
        %1168 = vdwg.mxu0
        %v1169 = vlaneseq
        %v1170 = vshrl.u32 %v1169, 7
        %v1171 = vlaneseq
        %v1172 = vand.u32 %v1171, 127
        %vm1173 = vcmp.gt.s32.totalorder %v1172, %v1170
        %v1174 = vsel %vm1173, %v1090, -1e+20
        %v1175 = vsel %vm1173, %v1166, -1e+20
        %vm1176 = vcmask 64512
        %v1177 = vsel %vm1176, %v1174, -inf
        %1178 = vmax.xlane.f32.xlu0 %v1177
        %v1179 = vpop.xlane.xlu0 %1178
        %v1180 = vsel %vm1176, %v1175, -inf
        %1181 = vmax.xlane.f32.xlu0 %v1180
        %v1182 = vpop.xlane.xlu0 %1181
        %v1183 = vsub.f32 %v1174, %v1179
        %v1184 = vsub.f32 %v1175, %v1182
        %v1185 = vmul.f32 %v1183, 1.442695
        %v1186 = vpow.pop %v1185
        %v1187 = vmul.f32 %v1184, 1.442695
        %v1188 = vpow.pop %v1187
        %v1189 = vsel %vm1176, %v1186, 0.0
        %1190 = vadd.xlane.f32.xlu0 %v1189
        %v1191 = vpop.xlane.xlu0 %1190
        %v1192 = vsel %vm1176, %v1188, 0.0
        %1193 = vadd.xlane.f32.xlu0 %v1192
        %v1194 = vpop.xlane.xlu0 %1193
        %v1195 = vrcp.pop %v1191
        %v1196 = vrcp.pop %v1194
        %v1197 = vmul.f32 %v1186, %v1195
        %v1198 = vmul.f32 %v1188, %v1196
        %v1199 = vld [vmem:[%s733] sm:$0xff]
        %v1200 = vld [vmem:[%s733 + $0x8] sm:$0xff]
        %v1201 = vld [vmem:[%s733 + $0x10] sm:$0xff]
        %v1202 = vld [vmem:[%s733 + $0x18] sm:$0xff]
        %1203 = vmatprep.subr.mxu0 0.0
        %1204 = vmatpush1.msra.mxu0 %v1199
        %1205 = vmatprep.subr.mxu0 0.0
        %1206 = vmatpush1.msra.mxu0 %v1200
        %1207 = vmatprep.subr.mxu0 0.0
        %1208 = vmatpush1.msra.mxu0 %v1201
        %1209 = vmatprep.subr.mxu0 0.0
        %1210 = vmatpush1.msra.mxu0 %v1202
        %1211 = vmatprep.subr.mxu0 0.0
        %1212 = vmatpush1.msra.mxu0 0.0
        %1213 = vmatprep.subr.mxu0 0.0
        %1214 = vmatpush1.msra.mxu0 0.0
        %1215 = vmatprep.subr.mxu0 0.0
        %1216 = vmatpush1.msra.mxu0 0.0
        %1217 = vmatprep.subr.mxu0 0.0
        %1218 = vmatpush1.msra.mxu0 0.0
        %1219 = vmatprep.subr.mxu0 0.0
        %1220 = vmatpush1.msra.mxu0 0.0
        %1221 = vmatprep.subr.mxu0 0.0
        %1222 = vmatpush1.msra.mxu0 0.0
        %1223 = vmatprep.subr.mxu0 0.0
        %1224 = vmatpush1.msra.mxu0 0.0
        %1225 = vmatprep.subr.mxu0 0.0
        %1226 = vmatpush1.msra.mxu0 0.0
        %1227 = vmatprep.subr.mxu0 0.0
        %1228 = vmatpush1.msra.mxu0 0.0
        %1229 = vmatprep.subr.mxu0 0.0
        %1230 = vmatpush1.msra.mxu0 0.0
        %1231 = vmatprep.subr.mxu0 0.0
        %1232 = vmatpush1.msra.mxu0 0.0
        %1233 = vmatprep.subr.mxu0 0.0
        %1234 = vmatpush1.msra.mxu0 0.0
        %1235 = vmatprep.subr.mxu0 0.0
        %1236 = vmatpush1.msra.mxu0 0.0
        %1237 = vmatprep.subr.mxu0 0.0
        %1238 = vmatpush1.msra.mxu0 0.0
        %1239 = vmatprep.subr.mxu0 0.0
        %1240 = vmatpush1.msra.mxu0 0.0
        %1241 = vmatprep.subr.mxu0 0.0
        %1242 = vmatpush1.msra.mxu0 0.0
        %1243 = vmatprep.subr.mxu0 0.0
        %1244 = vmatpush1.msra.mxu0 0.0
        %1245 = vmatprep.subr.mxu0 0.0
        %1246 = vmatpush1.msra.mxu0 0.0
        %1247 = vmatprep.subr.mxu0 0.0
        %1248 = vmatpush1.msra.mxu0 0.0
        %1249 = vmatprep.subr.mxu0 0.0
        %1250 = vmatpush1.msra.mxu0 0.0
        %1251 = vmatprep.subr.mxu0 0.0
        %1252 = vmatpush1.msra.mxu0 0.0
        %1253 = vmatprep.subr.mxu0 0.0
        %1254 = vmatpush1.msra.mxu0 0.0
        %1255 = vmatprep.subr.mxu0 0.0
        %1256 = vmatpush1.msra.mxu0 0.0
        %1257 = vmatprep.subr.mxu0 0.0
        %1258 = vmatpush1.msra.mxu0 0.0
        %1259 = vmatprep.subr.mxu0 0.0
        %1260 = vmatpush1.msra.mxu0 0.0
        %1261 = vmatprep.subr.mxu0 0.0
        %1262 = vmatpush1.msra.mxu0 0.0
        %1263 = vmatprep.subr.mxu0 0.0
        %1264 = vmatpush1.msra.mxu0 0.0
        %1265 = vmatprep.subr.mxu0 0.0
        %1266 = vmatpush1.msra.mxu0 0.0
        %1267 = vmatprep.mubr.f32.mxu0 0.0
        %1268 = vmatmul.mubr.f32.gmra.mrb[0].mxu0 %v1018
        %v1269 = vpop.f32.mrb[0].mxu0
        %v1270 = vadd.f32 0.0, %v1269
        %v1271 = vpop.f32.mrb[0].mxu0
        %1272 = vmatprep.mubr.f32.mxu0 0.0
        %1273 = vmatmul.mubr.f32.gmra.mrb[0].mxu0 %v1094
        %v1274 = vpop.f32.mrb[0].mxu0
        %v1275 = vadd.f32 0.0, %v1274
        %v1276 = vpop.f32.mrb[0].mxu0
        %1277 = vdwg.mxu0
        %v1278 = vsub.s32 %v1170, %v1172
        %vm1279 = vcmp.eq.s32.totalorder %v1278, 0
        %1281 = vset.pattern.permute.xlu0 7
        %1282 = vperm.xlu0 %1281, %v1270
        %v1283 = vpop.permute.xlu0 %1282
        %1286 = vset.pattern.permute.xlu0 7
        %1287 = vperm.xlu0 %1286, %v1275
        %v1288 = vpop.permute.xlu0 %1287
        %v1290 = vsel %vm1279, %v1283, 0.0
        %v1291 = vsel %vm1279, %v1288, 0.0
        %v1292 = vadd.f32 %v1197, %v1290
        %v1293 = vadd.f32 %v1198, %v1291
        %vm1294 = vcmp.eq.s32.totalorder %v1278, 1
        %1295 = vset.pattern.permute.xlu0 6
        %1296 = vperm.xlu0 %1295, %v1270
        %v1297 = vpop.permute.xlu0 %1296
        %1299 = vset.pattern.permute.xlu0 6
        %1300 = vperm.xlu0 %1299, %v1275
        %v1301 = vpop.permute.xlu0 %1300
        %v1303 = vsel %vm1294, %v1297, 0.0
        %v1304 = vsel %vm1294, %v1301, 0.0
        %v1305 = vadd.f32 %v1292, %v1303
        %v1306 = vadd.f32 %v1293, %v1304
        %vm1307 = vcmp.eq.s32.totalorder %v1278, 2
        %1308 = vset.pattern.permute.xlu0 5
        %1309 = vperm.xlu0 %1308, %v1270
        %v1310 = vpop.permute.xlu0 %1309
        %1312 = vset.pattern.permute.xlu0 5
        %1313 = vperm.xlu0 %1312, %v1275
        %v1314 = vpop.permute.xlu0 %1313
        %v1316 = vsel %vm1307, %v1310, 0.0
        %v1317 = vsel %vm1307, %v1314, 0.0
        %v1318 = vadd.f32 %v1305, %v1316
        %v1319 = vadd.f32 %v1306, %v1317
        %vm1320 = vcmp.eq.s32.totalorder %v1278, 3
        %1321 = vset.pattern.permute.xlu0 4
        %1322 = vperm.xlu0 %1321, %v1270
        %v1323 = vpop.permute.xlu0 %1322
        %1325 = vset.pattern.permute.xlu0 4
        %1326 = vperm.xlu0 %1325, %v1275
        %v1327 = vpop.permute.xlu0 %1326
        %v1329 = vsel %vm1320, %v1323, 0.0
        %v1330 = vsel %vm1320, %v1327, 0.0
        %v1331 = vadd.f32 %v1318, %v1329
        %v1332 = vadd.f32 %v1319, %v1330
        %vm1333 = vcmp.eq.s32.totalorder %v1278, 4
        %1334 = vset.pattern.permute.xlu0 3
        %1335 = vperm.xlu0 %1334, %v1270
        %v1336 = vpop.permute.xlu0 %1335
        %1338 = vset.pattern.permute.xlu0 3
        %1339 = vperm.xlu0 %1338, %v1275
        %v1340 = vpop.permute.xlu0 %1339
        %v1342 = vsel %vm1333, %v1336, 0.0
        %v1343 = vsel %vm1333, %v1340, 0.0
        %v1344 = vadd.f32 %v1331, %v1342
        %v1345 = vadd.f32 %v1332, %v1343
        %vm1346 = vcmp.eq.s32.totalorder %v1278, 5
        %1347 = vset.pattern.permute.xlu0 2
        %1348 = vperm.xlu0 %1347, %v1270
        %v1349 = vpop.permute.xlu0 %1348
        %1351 = vset.pattern.permute.xlu0 2
        %1352 = vperm.xlu0 %1351, %v1275
        %v1353 = vpop.permute.xlu0 %1352
        %v1355 = vsel %vm1346, %v1349, 0.0
        %v1356 = vsel %vm1346, %v1353, 0.0
        %v1357 = vadd.f32 %v1344, %v1355
        %v1358 = vadd.f32 %v1345, %v1356
        %vm1359 = vcmp.eq.s32.totalorder %v1278, 6
        %1360 = vset.pattern.permute.xlu0 1
        %1361 = vperm.xlu0 %1360, %v1270
        %v1362 = vpop.permute.xlu0 %1361
        %1364 = vset.pattern.permute.xlu0 1
        %1365 = vperm.xlu0 %1364, %v1275
        %v1366 = vpop.permute.xlu0 %1365
        %v1368 = vsel %vm1359, %v1362, 0.0
        %v1369 = vsel %vm1359, %v1366, 0.0
        %v1370 = vadd.f32 %v1357, %v1368
        %v1371 = vadd.f32 %v1358, %v1369
        %vm1372 = vcmp.eq.s32.totalorder %v1278, 7
        %1373 = vset.pattern.permute.xlu0 0
        %1374 = vperm.xlu0 %1373, %v1270
        %v1375 = vpop.permute.xlu0 %1374
        %1377 = vset.pattern.permute.xlu0 0
        %1378 = vperm.xlu0 %1377, %v1275
        %v1379 = vpop.permute.xlu0 %1378
        %v1381 = vsel %vm1372, %v1375, 0.0
        %v1382 = vsel %vm1372, %v1379, 0.0
        %v1383 = vadd.f32 %v1370, %v1381
        %v1384 = vadd.f32 %v1371, %v1382
        %v1386 = vsel %vm1176, %v1383, 0
        %1388 = vmatprep.subr.mxu0 0.0
        %1389 = vmatpush1.msra.mxu0 %v1009
        %1390 = vmatprep.subr.mxu0 0.0
        %1391 = vmatpush1.msra.mxu0 0.0
        %1392 = vmatprep.subr.mxu0 0.0
        %1393 = vmatpush1.msra.mxu0 0.0
        %1394 = vmatprep.subr.mxu0 0.0
        %1395 = vmatpush1.msra.mxu0 0.0
        %1396 = vmatprep.subr.mxu0 0.0
        %1397 = vmatpush1.msra.mxu0 0.0
        %1398 = vmatprep.subr.mxu0 0.0
        %1399 = vmatpush1.msra.mxu0 0.0
        %1400 = vmatprep.subr.mxu0 0.0
        %1401 = vmatpush1.msra.mxu0 0.0
        %1402 = vmatprep.subr.mxu0 0.0
        %1403 = vmatpush1.msra.mxu0 0.0
        %1404 = vmatprep.subr.mxu0 0.0
        %1405 = vmatpush1.msra.mxu0 0.0
        %1406 = vmatprep.subr.mxu0 0.0
        %1407 = vmatpush1.msra.mxu0 0.0
        %1408 = vmatprep.subr.mxu0 0.0
        %1409 = vmatpush1.msra.mxu0 0.0
        %1410 = vmatprep.subr.mxu0 0.0
        %1411 = vmatpush1.msra.mxu0 0.0
        %1412 = vmatprep.subr.mxu0 0.0
        %1413 = vmatpush1.msra.mxu0 0.0
        %1414 = vmatprep.subr.mxu0 0.0
        %1415 = vmatpush1.msra.mxu0 0.0
        %1416 = vmatprep.subr.mxu0 0.0
        %1417 = vmatpush1.msra.mxu0 0.0
        %1418 = vmatprep.subr.mxu0 0.0
        %1419 = vmatpush1.msra.mxu0 0.0
        %1420 = vmatprep.subr.mxu0 0.0
        %1421 = vmatpush1.msra.mxu0 0.0
        %1422 = vmatprep.subr.mxu0 0.0
        %1423 = vmatpush1.msra.mxu0 0.0
        %1424 = vmatprep.subr.mxu0 0.0
        %1425 = vmatpush1.msra.mxu0 0.0
        %1426 = vmatprep.subr.mxu0 0.0
        %1427 = vmatpush1.msra.mxu0 0.0
        %1428 = vmatprep.subr.mxu0 0.0
        %1429 = vmatpush1.msra.mxu0 0.0
        %1430 = vmatprep.subr.mxu0 0.0
        %1431 = vmatpush1.msra.mxu0 0.0
        %1432 = vmatprep.subr.mxu0 0.0
        %1433 = vmatpush1.msra.mxu0 0.0
        %1434 = vmatprep.subr.mxu0 0.0
        %1435 = vmatpush1.msra.mxu0 0.0
        %1436 = vmatprep.subr.mxu0 0.0
        %1437 = vmatpush1.msra.mxu0 0.0
        %1438 = vmatprep.subr.mxu0 0.0
        %1439 = vmatpush1.msra.mxu0 0.0
        %1440 = vmatprep.subr.mxu0 0.0
        %1441 = vmatpush1.msra.mxu0 0.0
        %1442 = vmatprep.subr.mxu0 0.0
        %1443 = vmatpush1.msra.mxu0 0.0
        %1444 = vmatprep.subr.mxu0 0.0
        %1445 = vmatpush1.msra.mxu0 0.0
        %1446 = vmatprep.subr.mxu0 0.0
        %1447 = vmatpush1.msra.mxu0 0.0
        %1448 = vmatprep.subr.mxu0 0.0
        %1449 = vmatpush1.msra.mxu0 0.0
        %1450 = vmatprep.subr.mxu0 0.0
        %1451 = vmatpush1.msra.mxu0 0.0
        %1452 = vmatprep.mubr.f32.mxu0 0.0
        %1453 = vmatmul.mubr.f32.gmra.mrb[0].mxu0 %v1386
        %v1454 = vpop.f32.mrb[0].mxu0
        %v1455 = vadd.f32 0.0, %v1454
        %v1456 = vpop.f32.mrb[0].mxu0
        %1457 = vdwg.mxu0
        %v1459 = vsel %vm1176, %v1384, 0
        %1461 = vmatprep.subr.mxu0 0.0
        %1462 = vmatpush1.msra.mxu0 %v1014
        %1463 = vmatprep.subr.mxu0 0.0
        %1464 = vmatpush1.msra.mxu0 0.0
        %1465 = vmatprep.subr.mxu0 0.0
        %1466 = vmatpush1.msra.mxu0 0.0
        %1467 = vmatprep.subr.mxu0 0.0
        %1468 = vmatpush1.msra.mxu0 0.0
        %1469 = vmatprep.subr.mxu0 0.0
        %1470 = vmatpush1.msra.mxu0 0.0
        %1471 = vmatprep.subr.mxu0 0.0
        %1472 = vmatpush1.msra.mxu0 0.0
        %1473 = vmatprep.subr.mxu0 0.0
        %1474 = vmatpush1.msra.mxu0 0.0
        %1475 = vmatprep.subr.mxu0 0.0
        %1476 = vmatpush1.msra.mxu0 0.0
        %1477 = vmatprep.subr.mxu0 0.0
        %1478 = vmatpush1.msra.mxu0 0.0
        %1479 = vmatprep.subr.mxu0 0.0
        %1480 = vmatpush1.msra.mxu0 0.0
        %1481 = vmatprep.subr.mxu0 0.0
        %1482 = vmatpush1.msra.mxu0 0.0
        %1483 = vmatprep.subr.mxu0 0.0
        %1484 = vmatpush1.msra.mxu0 0.0
        %1485 = vmatprep.subr.mxu0 0.0
        %1486 = vmatpush1.msra.mxu0 0.0
        %1487 = vmatprep.subr.mxu0 0.0
        %1488 = vmatpush1.msra.mxu0 0.0
        %1489 = vmatprep.subr.mxu0 0.0
        %1490 = vmatpush1.msra.mxu0 0.0
        %1491 = vmatprep.subr.mxu0 0.0
        %1492 = vmatpush1.msra.mxu0 0.0
        %1493 = vmatprep.subr.mxu0 0.0
        %1494 = vmatpush1.msra.mxu0 0.0
        %1495 = vmatprep.subr.mxu0 0.0
        %1496 = vmatpush1.msra.mxu0 0.0
        %1497 = vmatprep.subr.mxu0 0.0
        %1498 = vmatpush1.msra.mxu0 0.0
        %1499 = vmatprep.subr.mxu0 0.0
        %1500 = vmatpush1.msra.mxu0 0.0
        %1501 = vmatprep.subr.mxu0 0.0
        %1502 = vmatpush1.msra.mxu0 0.0
        %1503 = vmatprep.subr.mxu0 0.0
        %1504 = vmatpush1.msra.mxu0 0.0
        %1505 = vmatprep.subr.mxu0 0.0
        %1506 = vmatpush1.msra.mxu0 0.0
        %1507 = vmatprep.subr.mxu0 0.0
        %1508 = vmatpush1.msra.mxu0 0.0
        %1509 = vmatprep.subr.mxu0 0.0
        %1510 = vmatpush1.msra.mxu0 0.0
        %1511 = vmatprep.subr.mxu0 0.0
        %1512 = vmatpush1.msra.mxu0 0.0
        %1513 = vmatprep.subr.mxu0 0.0
        %1514 = vmatpush1.msra.mxu0 0.0
        %1515 = vmatprep.subr.mxu0 0.0
        %1516 = vmatpush1.msra.mxu0 0.0
        %1517 = vmatprep.subr.mxu0 0.0
        %1518 = vmatpush1.msra.mxu0 0.0
        %1519 = vmatprep.subr.mxu0 0.0
        %1520 = vmatpush1.msra.mxu0 0.0
        %1521 = vmatprep.subr.mxu0 0.0
        %1522 = vmatpush1.msra.mxu0 0.0
        %1523 = vmatprep.subr.mxu0 0.0
        %1524 = vmatpush1.msra.mxu0 0.0
        %1525 = vmatprep.mubr.f32.mxu0 0.0
        %1526 = vmatmul.mubr.f32.gmra.mrb[0].mxu0 %v1459
        %v1527 = vpop.f32.mrb[0].mxu0
        %v1528 = vadd.f32 0.0, %v1527
        %v1529 = vpop.f32.mrb[0].mxu0
        %1530 = vdwg.mxu0
        %v1531 = vld [vmem:[%s8] sm:$0xff]
        %v1532 = vld [vmem:[%s8 + $0x8] sm:$0xff]
        %v1533 = vld [vmem:[%s8 + $0x10] sm:$0xff]
        %v1534 = vld [vmem:[%s8 + $0x18] sm:$0xff]
        %v1535 = vld [vmem:[%s9] sm:$0x1]
        %v1537 = vlaneseq
        %v1538 = vshrl.u32 %v1537, 7
        %v1539 = vsub.s32 0, %v1538
        %v1540 = vrot.slane %v1535, %v1539
        %v1543 = vsel %vm763, %v1455, 0
        %v1546 = vsel %vm763, %v1528, 0
        %1548 = vmatprep.subr.mxu0 0.0
        %1549 = vmatpush1.msra.mxu0 %v1531
        %1550 = vmatprep.subr.mxu0 0.0
        %1551 = vmatpush1.msra.mxu0 %v1532
        %1552 = vmatprep.subr.mxu0 0.0
        %1553 = vmatpush1.msra.mxu0 %v1533
        %1554 = vmatprep.subr.mxu0 0.0
        %1555 = vmatpush1.msra.mxu0 %v1534
        %1556 = vmatprep.subr.mxu0 0.0
        %1557 = vmatpush1.msra.mxu0 0.0
        %1558 = vmatprep.subr.mxu0 0.0
        %1559 = vmatpush1.msra.mxu0 0.0
        %1560 = vmatprep.subr.mxu0 0.0
        %1561 = vmatpush1.msra.mxu0 0.0
        %1562 = vmatprep.subr.mxu0 0.0
        %1563 = vmatpush1.msra.mxu0 0.0
        %1564 = vmatprep.subr.mxu0 0.0
        %1565 = vmatpush1.msra.mxu0 0.0
        %1566 = vmatprep.subr.mxu0 0.0
        %1567 = vmatpush1.msra.mxu0 0.0
        %1568 = vmatprep.subr.mxu0 0.0
        %1569 = vmatpush1.msra.mxu0 0.0
        %1570 = vmatprep.subr.mxu0 0.0
        %1571 = vmatpush1.msra.mxu0 0.0
        %1572 = vmatprep.subr.mxu0 0.0
        %1573 = vmatpush1.msra.mxu0 0.0
        %1574 = vmatprep.subr.mxu0 0.0
        %1575 = vmatpush1.msra.mxu0 0.0
        %1576 = vmatprep.subr.mxu0 0.0
        %1577 = vmatpush1.msra.mxu0 0.0
        %1578 = vmatprep.subr.mxu0 0.0
        %1579 = vmatpush1.msra.mxu0 0.0
        %1580 = vmatprep.subr.mxu0 0.0
        %1581 = vmatpush1.msra.mxu0 0.0
        %1582 = vmatprep.subr.mxu0 0.0
        %1583 = vmatpush1.msra.mxu0 0.0
        %1584 = vmatprep.subr.mxu0 0.0
        %1585 = vmatpush1.msra.mxu0 0.0
        %1586 = vmatprep.subr.mxu0 0.0
        %1587 = vmatpush1.msra.mxu0 0.0
        %1588 = vmatprep.subr.mxu0 0.0
        %1589 = vmatpush1.msra.mxu0 0.0
        %1590 = vmatprep.subr.mxu0 0.0
        %1591 = vmatpush1.msra.mxu0 0.0
        %1592 = vmatprep.subr.mxu0 0.0
        %1593 = vmatpush1.msra.mxu0 0.0
        %1594 = vmatprep.subr.mxu0 0.0
        %1595 = vmatpush1.msra.mxu0 0.0
        %1596 = vmatprep.subr.mxu0 0.0
        %1597 = vmatpush1.msra.mxu0 0.0
        %1598 = vmatprep.subr.mxu0 0.0
        %1599 = vmatpush1.msra.mxu0 0.0
        %1600 = vmatprep.subr.mxu0 0.0
        %1601 = vmatpush1.msra.mxu0 0.0
        %1602 = vmatprep.subr.mxu0 0.0
        %1603 = vmatpush1.msra.mxu0 0.0
        %1604 = vmatprep.subr.mxu0 0.0
        %1605 = vmatpush1.msra.mxu0 0.0
        %1606 = vmatprep.subr.mxu0 0.0
        %1607 = vmatpush1.msra.mxu0 0.0
        %1608 = vmatprep.subr.mxu0 0.0
        %1609 = vmatpush1.msra.mxu0 0.0
        %1610 = vmatprep.subr.mxu0 0.0
        %1611 = vmatpush1.msra.mxu0 0.0
        %1612 = vmatprep.mubr.f32.mxu0 0.0
        %1613 = vmatmul.mubr.f32.gmra.mrb[0].mxu0 %v1543
        %v1614 = vpop.f32.mrb[0].mxu0
        %v1615 = vadd.f32 %v1540, %v1614
        %v1616 = vpop.f32.mrb[0].mxu0
        %1617 = vmatprep.mubr.f32.mxu0 0.0
        %1618 = vmatmul.mubr.f32.gmra.mrb[0].mxu0 %v1546
        %v1619 = vpop.f32.mrb[0].mxu0
        %v1620 = vadd.f32 %v1540, %v1619
        %v1621 = vpop.f32.mrb[0].mxu0
        %1622 = vdwg.mxu0
        %v1623 = vadd.f32 %v1615, %v750
        %v1624 = vadd.f32 %v1620, %v751
        %v1625 = vld [vmem:[%s737] sm:$0xff]
        %v1626 = vld [vmem:[%s741] sm:$0xff]
        %v1627 = vsel %vm763, %v1623, 0.0
        %1628 = vadd.xlane.f32.xlu0 %v1627
        %v1629 = vpop.xlane.xlu0 %1628
        %v1630 = vsel %vm763, %v1624, 0.0
        %1631 = vadd.xlane.f32.xlu0 %v1630
        %v1632 = vpop.xlane.xlu0 %1631
        %v1633 = vadd.f32 %v1629, %v1632
        %v1634 = vmul.f32 %v1633, 0.015625
        %v1635 = vsub.f32 %v1623, %v1634
        %v1636 = vsub.f32 %v1624, %v1634
        %v1637 = vmul.f32 %v1635, %v1635
        %v1638 = vmul.f32 %v1636, %v1636
        %v1639 = vsel %vm763, %v1637, 0.0
        %1640 = vadd.xlane.f32.xlu0 %v1639
        %v1641 = vpop.xlane.xlu0 %1640
        %v1642 = vsel %vm763, %v1638, 0.0
        %1643 = vadd.xlane.f32.xlu0 %v1642
        %v1644 = vpop.xlane.xlu0 %1643
        %v1645 = vadd.f32 %v1641, %v1644
        %v1646 = vmul.f32 %v1645, 0.015625
        %v1647 = vadd.f32 %v1646, 1e-05
        %v1648 = vrsqrt.pop %v1647
        %v1649 = vmul.f32 %v1648, %v1625
        %1651 = vset.pattern.permute.xlu0 0
        %1652 = vperm.xlu0 %1651, %v1649
        %v1653 = vpop.permute.xlu0 %1652
        %v1655 = vmul.f32 %v1635, %v1653
        %v1656 = vmul.f32 %v1636, %v1653
        %1658 = vset.pattern.permute.xlu0 0
        %1659 = vperm.xlu0 %1658, %v1626
        %v1660 = vpop.permute.xlu0 %1659
        %v1662 = vadd.f32 %v1655, %v1660
        %v1663 = vadd.f32 %v1656, %v1660
        %v1664 = vld [vmem:[%s12] sm:$0xff]
        %v1665 = vld [vmem:[%s12 + $0x8] sm:$0xff]
        %v1666 = vld [vmem:[%s12 + $0x10] sm:$0xff]
        %v1667 = vld [vmem:[%s12 + $0x18] sm:$0xff]
        %v1668 = vld [vmem:[%s13] sm:$0x1]
        %v1670 = vlaneseq
        %v1671 = vshrl.u32 %v1670, 7
        %v1672 = vsub.s32 0, %v1671
        %v1673 = vrot.slane %v1668, %v1672
        %v1676 = vsel %vm763, %v1662, 0
        %v1679 = vsel %vm763, %v1663, 0
        %1681 = vmatprep.subr.mxu0 0.0
        %1682 = vmatpush1.msra.mxu0 %v1664
        %1683 = vmatprep.subr.mxu0 0.0
        %1684 = vmatpush1.msra.mxu0 %v1665
        %1685 = vmatprep.subr.mxu0 0.0
        %1686 = vmatpush1.msra.mxu0 %v1666
        %1687 = vmatprep.subr.mxu0 0.0
        %1688 = vmatpush1.msra.mxu0 %v1667
        %1689 = vmatprep.subr.mxu0 0.0
        %1690 = vmatpush1.msra.mxu0 0.0
        %1691 = vmatprep.subr.mxu0 0.0
        %1692 = vmatpush1.msra.mxu0 0.0
        %1693 = vmatprep.subr.mxu0 0.0
        %1694 = vmatpush1.msra.mxu0 0.0
        %1695 = vmatprep.subr.mxu0 0.0
        %1696 = vmatpush1.msra.mxu0 0.0
        %1697 = vmatprep.subr.mxu0 0.0
        %1698 = vmatpush1.msra.mxu0 0.0
        %1699 = vmatprep.subr.mxu0 0.0
        %1700 = vmatpush1.msra.mxu0 0.0
        %1701 = vmatprep.subr.mxu0 0.0
        %1702 = vmatpush1.msra.mxu0 0.0
        %1703 = vmatprep.subr.mxu0 0.0
        %1704 = vmatpush1.msra.mxu0 0.0
        %1705 = vmatprep.subr.mxu0 0.0
        %1706 = vmatpush1.msra.mxu0 0.0
        %1707 = vmatprep.subr.mxu0 0.0
        %1708 = vmatpush1.msra.mxu0 0.0
        %1709 = vmatprep.subr.mxu0 0.0
        %1710 = vmatpush1.msra.mxu0 0.0
        %1711 = vmatprep.subr.mxu0 0.0
        %1712 = vmatpush1.msra.mxu0 0.0
        %1713 = vmatprep.subr.mxu0 0.0
        %1714 = vmatpush1.msra.mxu0 0.0
        %1715 = vmatprep.subr.mxu0 0.0
        %1716 = vmatpush1.msra.mxu0 0.0
        %1717 = vmatprep.subr.mxu0 0.0
        %1718 = vmatpush1.msra.mxu0 0.0
        %1719 = vmatprep.subr.mxu0 0.0
        %1720 = vmatpush1.msra.mxu0 0.0
        %1721 = vmatprep.subr.mxu0 0.0
        %1722 = vmatpush1.msra.mxu0 0.0
        %1723 = vmatprep.subr.mxu0 0.0
        %1724 = vmatpush1.msra.mxu0 0.0
        %1725 = vmatprep.subr.mxu0 0.0
        %1726 = vmatpush1.msra.mxu0 0.0
        %1727 = vmatprep.subr.mxu0 0.0
        %1728 = vmatpush1.msra.mxu0 0.0
        %1729 = vmatprep.subr.mxu0 0.0
        %1730 = vmatpush1.msra.mxu0 0.0
        %1731 = vmatprep.subr.mxu0 0.0
        %1732 = vmatpush1.msra.mxu0 0.0
        %1733 = vmatprep.subr.mxu0 0.0
        %1734 = vmatpush1.msra.mxu0 0.0
        %1735 = vmatprep.subr.mxu0 0.0
        %1736 = vmatpush1.msra.mxu0 0.0
        %1737 = vmatprep.subr.mxu0 0.0
        %1738 = vmatpush1.msra.mxu0 0.0
        %1739 = vmatprep.subr.mxu0 0.0
        %1740 = vmatpush1.msra.mxu0 0.0
        %1741 = vmatprep.subr.mxu0 0.0
        %1742 = vmatpush1.msra.mxu0 0.0
        %1743 = vmatprep.subr.mxu0 0.0
        %1744 = vmatpush1.msra.mxu0 0.0
        %1745 = vmatprep.mubr.f32.mxu0 0.0
        %1746 = vmatmul.mubr.f32.gmra.mrb[0].mxu0 %v1676
        %v1747 = vpop.f32.mrb[0].mxu0
        %v1748 = vadd.f32 %v1673, %v1747
        %v1749 = vpop.f32.mrb[0].mxu0
        %1750 = vmatprep.mubr.f32.mxu0 0.0
        %1751 = vmatmul.mubr.f32.gmra.mrb[0].mxu0 %v1679
        %v1752 = vpop.f32.mrb[0].mxu0
        %v1753 = vadd.f32 %v1673, %v1752
        %v1754 = vpop.f32.mrb[0].mxu0
        %1755 = vdwg.mxu0
        %vm1756 = vcmp.ge.f32.partialorder %v1748, 0.0
        %vm1757 = vcmp.ge.f32.partialorder %v1753, 0.0
        %v1758 = vmul.f32 %v1748, 0.01
        %v1759 = vmul.f32 %v1753, 0.01
        %v1760 = vsel %vm1756, %v1748, %v1758
        %v1761 = vsel %vm1757, %v1753, %v1759
        %v1762 = vld [vmem:[%s14] sm:$0xff]
        %v1763 = vld [vmem:[%s14 + $0x8] sm:$0xff]
        %v1764 = vld [vmem:[%s14 + $0x10] sm:$0xff]
        %v1765 = vld [vmem:[%s14 + $0x18] sm:$0xff]
        %v1766 = vld [vmem:[%s14 + $0x20] sm:$0xff]
        %v1767 = vld [vmem:[%s14 + $0x28] sm:$0xff]
        %v1768 = vld [vmem:[%s14 + $0x30] sm:$0xff]
        %v1769 = vld [vmem:[%s14 + $0x38] sm:$0xff]
        %v1770 = vld [vmem:[%s15] sm:$0x1]
        %v1772 = vlaneseq
        %v1773 = vshrl.u32 %v1772, 7
        %v1774 = vsub.s32 0, %v1773
        %v1775 = vrot.slane %v1770, %v1774
        %vm1777 = vcmask 523264
        %v1779 = vsel %vm1777, %v1760, 0
        %v1782 = vsel %vm1777, %v1761, 0
        %1784 = vmatprep.subr.mxu0 0.0
        %1785 = vmatpush1.msra.mxu0 %v1762
        %1786 = vmatprep.subr.mxu0 0.0
        %1787 = vmatpush1.msra.mxu0 %v1763
        %1788 = vmatprep.subr.mxu0 0.0
        %1789 = vmatpush1.msra.mxu0 %v1764
        %1790 = vmatprep.subr.mxu0 0.0
        %1791 = vmatpush1.msra.mxu0 %v1765
        %1792 = vmatprep.subr.mxu0 0.0
        %1793 = vmatpush1.msra.mxu0 %v1766
        %1794 = vmatprep.subr.mxu0 0.0
        %1795 = vmatpush1.msra.mxu0 %v1767
        %1796 = vmatprep.subr.mxu0 0.0
        %1797 = vmatpush1.msra.mxu0 %v1768
        %1798 = vmatprep.subr.mxu0 0.0
        %1799 = vmatpush1.msra.mxu0 %v1769
        %1800 = vmatprep.subr.mxu0 0.0
        %1801 = vmatpush1.msra.mxu0 0.0
        %1802 = vmatprep.subr.mxu0 0.0
        %1803 = vmatpush1.msra.mxu0 0.0
        %1804 = vmatprep.subr.mxu0 0.0
        %1805 = vmatpush1.msra.mxu0 0.0
        %1806 = vmatprep.subr.mxu0 0.0
        %1807 = vmatpush1.msra.mxu0 0.0
        %1808 = vmatprep.subr.mxu0 0.0
        %1809 = vmatpush1.msra.mxu0 0.0
        %1810 = vmatprep.subr.mxu0 0.0
        %1811 = vmatpush1.msra.mxu0 0.0
        %1812 = vmatprep.subr.mxu0 0.0
        %1813 = vmatpush1.msra.mxu0 0.0
        %1814 = vmatprep.subr.mxu0 0.0
        %1815 = vmatpush1.msra.mxu0 0.0
        %1816 = vmatprep.subr.mxu0 0.0
        %1817 = vmatpush1.msra.mxu0 0.0
        %1818 = vmatprep.subr.mxu0 0.0
        %1819 = vmatpush1.msra.mxu0 0.0
        %1820 = vmatprep.subr.mxu0 0.0
        %1821 = vmatpush1.msra.mxu0 0.0
        %1822 = vmatprep.subr.mxu0 0.0
        %1823 = vmatpush1.msra.mxu0 0.0
        %1824 = vmatprep.subr.mxu0 0.0
        %1825 = vmatpush1.msra.mxu0 0.0
        %1826 = vmatprep.subr.mxu0 0.0
        %1827 = vmatpush1.msra.mxu0 0.0
        %1828 = vmatprep.subr.mxu0 0.0
        %1829 = vmatpush1.msra.mxu0 0.0
        %1830 = vmatprep.subr.mxu0 0.0
        %1831 = vmatpush1.msra.mxu0 0.0
        %1832 = vmatprep.subr.mxu0 0.0
        %1833 = vmatpush1.msra.mxu0 0.0
        %1834 = vmatprep.subr.mxu0 0.0
        %1835 = vmatpush1.msra.mxu0 0.0
        %1836 = vmatprep.subr.mxu0 0.0
        %1837 = vmatpush1.msra.mxu0 0.0
        %1838 = vmatprep.subr.mxu0 0.0
        %1839 = vmatpush1.msra.mxu0 0.0
        %1840 = vmatprep.subr.mxu0 0.0
        %1841 = vmatpush1.msra.mxu0 0.0
        %1842 = vmatprep.subr.mxu0 0.0
        %1843 = vmatpush1.msra.mxu0 0.0
        %1844 = vmatprep.subr.mxu0 0.0
        %1845 = vmatpush1.msra.mxu0 0.0
        %1846 = vmatprep.subr.mxu0 0.0
        %1847 = vmatpush1.msra.mxu0 0.0
        %1848 = vmatprep.mubr.f32.mxu0 0.0
        %1849 = vmatmul.mubr.f32.gmra.mrb[0].mxu0 %v1779
        %v1850 = vpop.f32.mrb[0].mxu0
        %v1851 = vadd.f32 %v1775, %v1850
        %v1852 = vpop.f32.mrb[0].mxu0
        %1853 = vmatprep.mubr.f32.mxu0 0.0
        %1854 = vmatmul.mubr.f32.gmra.mrb[0].mxu0 %v1782
        %v1855 = vpop.f32.mrb[0].mxu0
        %v1856 = vadd.f32 %v1775, %v1855
        %v1857 = vpop.f32.mrb[0].mxu0
        %1858 = vdwg.mxu0
        %v1859 = vadd.f32 %v1851, %v1662
        %v1860 = vadd.f32 %v1856, %v1663
        %v1861 = vld [vmem:[%s745] sm:$0xff]
        %v1862 = vld [vmem:[%s749] sm:$0xff]
        %v1863 = vsel %vm763, %v1859, 0.0
        %1864 = vadd.xlane.f32.xlu0 %v1863
        %v1865 = vpop.xlane.xlu0 %1864
        %v1866 = vsel %vm763, %v1860, 0.0
        %1867 = vadd.xlane.f32.xlu0 %v1866
        %v1868 = vpop.xlane.xlu0 %1867
        %v1869 = vadd.f32 %v1865, %v1868
        %v1870 = vmul.f32 %v1869, 0.015625
        %v1871 = vsub.f32 %v1859, %v1870
        %v1872 = vsub.f32 %v1860, %v1870
        %v1873 = vmul.f32 %v1871, %v1871
        %v1874 = vmul.f32 %v1872, %v1872
        %v1875 = vsel %vm763, %v1873, 0.0
        %1876 = vadd.xlane.f32.xlu0 %v1875
        %v1877 = vpop.xlane.xlu0 %1876
        %v1878 = vsel %vm763, %v1874, 0.0
        %1879 = vadd.xlane.f32.xlu0 %v1878
        %v1880 = vpop.xlane.xlu0 %1879
        %v1881 = vadd.f32 %v1877, %v1880
        %v1882 = vmul.f32 %v1881, 0.015625
        %v1883 = vadd.f32 %v1882, 1e-05
        %v1884 = vrsqrt.pop %v1883
        %v1885 = vmul.f32 %v1884, %v1861
        %1887 = vset.pattern.permute.xlu0 0
        %1888 = vperm.xlu0 %1887, %v1885
        %v1889 = vpop.permute.xlu0 %1888
        %v1891 = vmul.f32 %v1871, %v1889
        %v1892 = vmul.f32 %v1872, %v1889
        %1894 = vset.pattern.permute.xlu0 0
        %1895 = vperm.xlu0 %1894, %v1862
        %v1896 = vpop.permute.xlu0 %1895
        %v1898 = vadd.f32 %v1891, %v1896
        %v1899 = vadd.f32 %v1892, %v1896
        %v1900 = vld [vmem:[%s18] sm:$0xff]
        %v1901 = vld [vmem:[%s18 + $0x8] sm:$0xff]
        %v1902 = vld [vmem:[%s18 + $0x10] sm:$0xff]
        %v1903 = vld [vmem:[%s18 + $0x18] sm:$0xff]
        %v1904 = vld [vmem:[%s19] sm:$0x1]
        %v1906 = vlaneseq
        %v1907 = vshrl.u32 %v1906, 7
        %v1908 = vsub.s32 0, %v1907
        %v1909 = vrot.slane %v1904, %v1908
        %v1912 = vsel %vm763, %v1898, 0
        %v1915 = vsel %vm763, %v1899, 0
        %1917 = vmatprep.subr.mxu0 0.0
        %1918 = vmatpush1.msra.mxu0 %v1900
        %1919 = vmatprep.subr.mxu0 0.0
        %1920 = vmatpush1.msra.mxu0 %v1901
        %1921 = vmatprep.subr.mxu0 0.0
        %1922 = vmatpush1.msra.mxu0 %v1902
        %1923 = vmatprep.subr.mxu0 0.0
        %1924 = vmatpush1.msra.mxu0 %v1903
        %1925 = vmatprep.subr.mxu0 0.0
        %1926 = vmatpush1.msra.mxu0 0.0
        %1927 = vmatprep.subr.mxu0 0.0
        %1928 = vmatpush1.msra.mxu0 0.0
        %1929 = vmatprep.subr.mxu0 0.0
        %1930 = vmatpush1.msra.mxu0 0.0
        %1931 = vmatprep.subr.mxu0 0.0
        %1932 = vmatpush1.msra.mxu0 0.0
        %1933 = vmatprep.subr.mxu0 0.0
        %1934 = vmatpush1.msra.mxu0 0.0
        %1935 = vmatprep.subr.mxu0 0.0
        %1936 = vmatpush1.msra.mxu0 0.0
        %1937 = vmatprep.subr.mxu0 0.0
        %1938 = vmatpush1.msra.mxu0 0.0
        %1939 = vmatprep.subr.mxu0 0.0
        %1940 = vmatpush1.msra.mxu0 0.0
        %1941 = vmatprep.subr.mxu0 0.0
        %1942 = vmatpush1.msra.mxu0 0.0
        %1943 = vmatprep.subr.mxu0 0.0
        %1944 = vmatpush1.msra.mxu0 0.0
        %1945 = vmatprep.subr.mxu0 0.0
        %1946 = vmatpush1.msra.mxu0 0.0
        %1947 = vmatprep.subr.mxu0 0.0
        %1948 = vmatpush1.msra.mxu0 0.0
        %1949 = vmatprep.subr.mxu0 0.0
        %1950 = vmatpush1.msra.mxu0 0.0
        %1951 = vmatprep.subr.mxu0 0.0
        %1952 = vmatpush1.msra.mxu0 0.0
        %1953 = vmatprep.subr.mxu0 0.0
        %1954 = vmatpush1.msra.mxu0 0.0
        %1955 = vmatprep.subr.mxu0 0.0
        %1956 = vmatpush1.msra.mxu0 0.0
        %1957 = vmatprep.subr.mxu0 0.0
        %1958 = vmatpush1.msra.mxu0 0.0
        %1959 = vmatprep.subr.mxu0 0.0
        %1960 = vmatpush1.msra.mxu0 0.0
        %1961 = vmatprep.subr.mxu0 0.0
        %1962 = vmatpush1.msra.mxu0 0.0
        %1963 = vmatprep.subr.mxu0 0.0
        %1964 = vmatpush1.msra.mxu0 0.0
        %1965 = vmatprep.subr.mxu0 0.0
        %1966 = vmatpush1.msra.mxu0 0.0
        %1967 = vmatprep.subr.mxu0 0.0
        %1968 = vmatpush1.msra.mxu0 0.0
        %1969 = vmatprep.subr.mxu0 0.0
        %1970 = vmatpush1.msra.mxu0 0.0
        %1971 = vmatprep.subr.mxu0 0.0
        %1972 = vmatpush1.msra.mxu0 0.0
        %1973 = vmatprep.subr.mxu0 0.0
        %1974 = vmatpush1.msra.mxu0 0.0
        %1975 = vmatprep.subr.mxu0 0.0
        %1976 = vmatpush1.msra.mxu0 0.0
        %1977 = vmatprep.subr.mxu0 0.0
        %1978 = vmatpush1.msra.mxu0 0.0
        %1979 = vmatprep.subr.mxu0 0.0
        %1980 = vmatpush1.msra.mxu0 0.0
        %1981 = vmatprep.mubr.f32.mxu0 0.0
        %1982 = vmatmul.mubr.f32.gmra.mrb[0].mxu0 %v1912
        %v1983 = vpop.f32.mrb[0].mxu0
        %v1984 = vadd.f32 %v1909, %v1983
        %v1985 = vpop.f32.mrb[0].mxu0
        %1986 = vmatprep.mubr.f32.mxu0 0.0
        %1987 = vmatmul.mubr.f32.gmra.mrb[0].mxu0 %v1915
        %v1988 = vpop.f32.mrb[0].mxu0
        %v1989 = vadd.f32 %v1909, %v1988
        %v1990 = vpop.f32.mrb[0].mxu0
        %1991 = vdwg.mxu0
        %1992 = vst.msk [vmem:[%s728] sm:$0xff] %vm763, %v1984
        %1993 = vst.msk [vmem:[%s728 + $0x8] sm:$0xff] %vm763, %v1989
        %s1994 = sand.u32 %s489, 1
        %s1995 = sand.u32 %s489, 1
        %s1996 = smul.addr %s1995, 16
        %s1997 = scalar_lea.vmem [#allocation3], %s1996
        // Predicated region
        $region139: #{_lambda_.1} parent=133 // pred_check
          %p1998 = pneg %p499
        $region140: #{_lambda_.1} parent=133 // pred_check_branch
          %2000 = sbr.rel (%p1998) target = $region142
        $region141: #{_lambda_.1} parent=133 // pred_region
          %s2001 = smul.addr %s31, 8
          %s2002 = scalar_lea.vmem %s20, %s2001
          // Predicated region
          $region143: #{_lambda_.1} parent=141 // pred_check
            _
          $region144: #{_lambda_.1} parent=141 // pred_check_branch
            %2004 = sbr.rel (0) target = $region146
          $region145: #{_lambda_.1} parent=141 // pred_region
            // Predicated region
            $region147: #{_lambda_.1} parent=145 // pred_check
              _
            $region148: #{_lambda_.1} parent=145 // pred_check_branch
              %2006 = sbr.rel (0) target = $region150
            $region149: #{_lambda_.1} parent=145 // pred_region
              // Predicated region
              $region162: #{_lambda_.1} parent=149 // pred_check
                _
              $region163: #{_lambda_.1} parent=149 // pred_check_branch
                %2023 = sbr.rel (0) target = $region165
              $region164: #{_lambda_.1} parent=149 // pred_region
                loop: start=0, step=1, limit=1
                $region166: #{_lambda_.1} parent=164 // loop_pre_header
                  _
                $region167: #{_lambda_.1} parent=164 // loop_header
                  %s2025 = sphi 0, %s2029
                  %p2026 = scmp.ge.s32.totalorder %s2025, 1
                  %s2030 = sphi %s1997, %s1997
                  %s2031 = sphi %s2002, %s2002
                $region168: #{_lambda_.1} parent=164 // loop_header_branch
                  %2028 = sbr.rel (%p2026) target = $region172
                $region169: #{_lambda_.1} parent=164 // loop_body
                  %v2032 = vld [vmem:[%s2030] sm:$0xff]
                  %2033 = vst [vmem:[%s2031] sm:$0xff] %v2032
                  %v2034 = vld [vmem:[%s2030 + $0x8] sm:$0xff]
                  %2035 = vst [vmem:[%s2031 + $0x10] sm:$0xff] %v2034
                $region170: #{_lambda_.1} parent=164 // loop_footer
                  %s2029 = sadd.s32 1, %s2025
                $region171: #{_lambda_.1} parent=164 // loop_footer_branch
                  %2024 = sbr.rel target = $region167
                $region172: #{_lambda_.1} parent=164 // loop_exit
                  _
              $region165: #{_lambda_.1} parent=149 // pred_fallthru
                _
              // Predicated region
              $region173: #{_lambda_.1} parent=149 // pred_check
                _
              $region174: #{_lambda_.1} parent=149 // pred_check_branch
                %2037 = sbr.rel target = $region176
              $region175: #{_lambda_.1} parent=149 // pred_region
                _
              $region176: #{_lambda_.1} parent=149 // pred_fallthru
                _
            $region150: #{_lambda_.1} parent=145 // pred_fallthru
              _
            // Predicated region
            $region151: #{_lambda_.1} parent=145 // pred_check
              _
            $region152: #{_lambda_.1} parent=145 // pred_check_branch
              %2008 = sbr.rel target = $region154
            $region153: #{_lambda_.1} parent=145 // pred_region
              loop: start=0, step=1, limit=1
              $region155: #{_lambda_.1} parent=153 // loop_pre_header
                _
              $region156: #{_lambda_.1} parent=153 // loop_header
                %s2011 = sphi 0, %s2015
                %p2012 = scmp.ge.s32.totalorder %s2011, 1
                %s2016 = sphi %s1997, %s1997
                %s2017 = sphi %s2002, %s2002
              $region157: #{_lambda_.1} parent=153 // loop_header_branch
                %2014 = sbr.rel (%p2012) target = $region161
              $region158: #{_lambda_.1} parent=153 // loop_body
                %v2018 = vld [vmem:[%s2016] sm:$0xff]
                %2019 = vst [vmem:[%s2017] sm:$0xff] %v2018
                %v2020 = vld [vmem:[%s2016 + $0x8] sm:$0xff]
                %2021 = vst [vmem:[%s2017 + $0x10] sm:$0xff] %v2020
              $region159: #{_lambda_.1} parent=153 // loop_footer
                %s2015 = sadd.s32 1, %s2011
              $region160: #{_lambda_.1} parent=153 // loop_footer_branch
                %2010 = sbr.rel target = $region156
              $region161: #{_lambda_.1} parent=153 // loop_exit
                _
            $region154: #{_lambda_.1} parent=145 // pred_fallthru
              _
          $region146: #{_lambda_.1} parent=141 // pred_fallthru
            _
          %2038 = vnop
        $region142: #{_lambda_.1} parent=133 // pred_fallthru
          _
      $region134: #{_lambda_.1} parent=5 // pred_fallthru
        _
      %p2039 = scmp.le.s32.totalorder 2, %s26
      // Predicated region
      $region177: #{_lambda_.1} parent=5 // pred_check
        %p2040 = pneg %p2039
      $region178: #{_lambda_.1} parent=5 // pred_check_branch
        %2042 = sbr.rel (%p2040) target = $region180
      $region179: #{_lambda_.1} parent=5 // pred_region
        %s2043 = ssub.s32 %s26, 2
        // Predicated region
        $region181: #{_lambda_.1} parent=179 // pred_check
          %p2044 = pneg %p505
        $region182: #{_lambda_.1} parent=179 // pred_check_branch
          %2046 = sbr.rel (%p2044) target = $region184
        $region183: #{_lambda_.1} parent=179 // pred_region
          %s2047 = sand.u32 %s490, 1
          %s2048 = sand.u32 %s490, 1
          %s2049 = smul.addr %s2048, 16
          %s2050 = scalar_lea.vmem [#allocation3], %s2049
        $region184: #{_lambda_.1} parent=179 // pred_fallthru
          _
      $region180: #{_lambda_.1} parent=5 // pred_fallthru
        _
    $region6: #{_lambda_.1} parent=1 // loop_footer
      %s30 = sadd.s32 1, %s26
    $region7: #{_lambda_.1} parent=1 // loop_footer_branch
      %25 = sbr.rel target = $region3
    $region8: #{_lambda_.1} parent=1 // loop_exit
      _

</llo_original>
